<compile_context>
chip_gen: v7x
topology: tpu7x:2x2x1
jax: 0.10.0
libtpu: 0.0.40
codegen_flags: <defaults>
</compile_context>

<pallas_src>
import functools

import jax
import jax.numpy as jnp
from jax.experimental import pallas as pl
from jax.experimental.pallas import tpu as pltpu


# ----------------------------------------------------------------------------- kernel
def charrnn_seq_kernel(ids_ref,                                   # SMEM (T, B) int32
                       emb_ref, h0_ref,
                       wih0_ref, whh0_ref, bi0_ref, bhn0_ref,
                       wih1_ref, whh1_ref, bi1_ref, bhn1_ref,
                       decw_ref, decb_ref,
                       out_ref, hnew_ref):
    t = pl.program_id(0)
    B = hnew_ref.shape[1]
    Hp = hnew_ref.shape[2]

    # First step: seed the resident hidden-state block from the user-provided hidden.
    @pl.when(t == 0)
    def _():
        hnew_ref[...] = h0_ref[...]

    # --- Embedding gather (token ids live in SMEM via scalar prefetch) ---
    rows = [emb_ref[pl.ds(ids_ref[t, b], 1), :] for b in range(B)]
    x = jnp.concatenate(rows, axis=0)                              # (B, Hp)

    def gru_cell(x_in, h_in, wih, whh, bi, bhn):
        # wih/whh are pre-transposed (Hp, 3*Hp); bi has r/z biases pre-summed and the
        # n-slot holds b_in; bhn is b_hn (needed inside the r * (...) term).
        gi = jnp.dot(x_in, wih, preferred_element_type=jnp.float32) + bi   # (B, 3Hp)
        gh = jnp.dot(h_in, whh, preferred_element_type=jnp.float32)        # (B, 3Hp)
        r = jax.nn.sigmoid(gi[:, 0:Hp] + gh[:, 0:Hp])
        z = jax.nn.sigmoid(gi[:, Hp:2 * Hp] + gh[:, Hp:2 * Hp])
        n = jnp.tanh(gi[:, 2 * Hp:] + r * (gh[:, 2 * Hp:] + bhn))
        return (1.0 - z) * n + z * h_in

    h_l0 = hnew_ref[0]                                             # (B, Hp)
    h_l1 = hnew_ref[1]                                             # (B, Hp)

    h1 = gru_cell(x, h_l0, wih0_ref[...], whh0_ref[...], bi0_ref[...], bhn0_ref[...])
    h2 = gru_cell(h1, h_l1, wih1_ref[...], whh1_ref[...], bi1_ref[...], bhn1_ref[...])

    # --- Decoder: Linear(Hp -> Op), lane-dense padded logits ---
    out_ref[0] = jnp.dot(h2, decw_ref[...], preferred_element_type=jnp.float32) \
        + decb_ref[...]

    # Carry hidden state to the next grid step (written back to HBM once, at the end).
    hnew_ref[0] = h1
    hnew_ref[1] = h2


# ----------------------------------------------------------------------------- wrapper
def _round_up(x, m):
    return ((x + m - 1) // m) * m


def pack_params(params, hidden_size):
    """One-time host-side layout plumbing: transpose, gate-pad and bias-fold weights."""
    H = hidden_size
    Hp = max(_round_up(H, 128), 128)
    V = params["emb"].shape[0]
    O = params["dec_w"].shape[0]
    Vp = _round_up(V, 8)
    Op = _round_up(O, 128)

    def pack_w(w):                                   # (3H, H) -> (Hp, 3*Hp), transposed
        out = jnp.zeros((Hp, 3 * Hp), jnp.float32)
        for g in range(3):
            out = out.at[:H, g * Hp:g * Hp + H].set(w[g * H:(g + 1) * H, :].T)
        return out

    def pack_bi(b_ih, b_hh):                         # r/z biases pre-summed, n = b_in
        out = jnp.zeros((1, 3 * Hp), jnp.float32)
        out = out.at[0, 0 * Hp:0 * Hp + H].set(b_ih[0:H] + b_hh[0:H])
        out = out.at[0, 1 * Hp:1 * Hp + H].set(b_ih[H:2 * H] + b_hh[H:2 * H])
        out = out.at[0, 2 * Hp:2 * Hp + H].set(b_ih[2 * H:3 * H])
        return out

    def pack_bhn(b_hh):                              # (1, Hp) with b_hn in first H lanes
        return jnp.zeros((1, Hp), jnp.float32).at[0, :H].set(b_hh[2 * H:3 * H])

    return {
        "H": H, "Hp": Hp, "V": V, "Vp": Vp, "O": O, "Op": Op,
        "emb": jnp.zeros((Vp, Hp), jnp.float32).at[:V, :H].set(params["emb"]),
        "wih0": pack_w(params["w_ih_l0"]), "whh0": pack_w(params["w_hh_l0"]),
        "bi0": pack_bi(params["b_ih_l0"], params["b_hh_l0"]),
        "bhn0": pack_bhn(params["b_hh_l0"]),
        "wih1": pack_w(params["w_ih_l1"]), "whh1": pack_w(params["w_hh_l1"]),
        "bi1": pack_bi(params["b_ih_l1"], params["b_hh_l1"]),
        "bhn1": pack_bhn(params["b_hh_l1"]),
        "decw": jnp.zeros((Hp, Op), jnp.float32).at[:H, :O].set(params["dec_w"].T),
        "decb": jnp.zeros((1, Op), jnp.float32).at[0, :O].set(params["dec_b"]),
    }


def char_rnn_forward_seq(ids, hidden, pk):
    """ids: (T, B) int32 tokens; hidden: (L=2, B, H) f32.
    Runs T CharRNN.forward steps in one pallas_call.
    Returns (logits (T, B, O), hidden' (L, B, H))."""
    T, B = ids.shape
    L, _, H = hidden.shape
    Hp, Op, O = pk["Hp"], pk["Op"], pk["O"]

    h0 = jnp.zeros((L, B, Hp), jnp.float32).at[:, :, :H].set(hidden)

    const2 = lambda t, ids_sref: (0, 0)
    const3 = lambda t, ids_sref: (0, 0, 0)

    grid_spec = pltpu.PrefetchScalarGridSpec(
        num_scalar_prefetch=1,
        grid=(T,),
        in_specs=[
            pl.BlockSpec(pk["emb"].shape, const2),              # emb      (resident)
            pl.BlockSpec((L, B, Hp), const3),                   # h0       (resident)
            pl.BlockSpec((Hp, 3 * Hp), const2),                 # wih0
            pl.BlockSpec((Hp, 3 * Hp), const2),                 # whh0
            pl.BlockSpec((1, 3 * Hp), const2),                  # bi0
            pl.BlockSpec((1, Hp), const2),                      # bhn0
            pl.BlockSpec((Hp, 3 * Hp), const2),                 # wih1
            pl.BlockSpec((Hp, 3 * Hp), const2),                 # whh1
            pl.BlockSpec((1, 3 * Hp), const2),                  # bi1
            pl.BlockSpec((1, Hp), const2),                      # bhn1
            pl.BlockSpec((Hp, Op), const2),                     # decw
            pl.BlockSpec((1, Op), const2),                      # decb
        ],
        out_specs=(
            pl.BlockSpec((1, B, Op), lambda t, ids_sref: (t, 0, 0)),   # per-step logits
            pl.BlockSpec((L, B, Hp), const3),                          # carried hidden
        ),
    )

    logits_p, hnew_p = pl.pallas_call(
        charrnn_seq_kernel,
        out_shape=(
            jax.ShapeDtypeStruct((T, B, Op), jnp.float32),
            jax.ShapeDtypeStruct((L, B, Hp), jnp.float32),
        ),
        grid_spec=grid_spec,
        compiler_params=pltpu.CompilerParams(dimension_semantics=("arbitrary",)),
    )(ids.astype(jnp.int32), pk["emb"], h0,
      pk["wih0"], pk["whh0"], pk["bi0"], pk["bhn0"],
      pk["wih1"], pk["whh1"], pk["bi1"], pk["bhn1"],
      pk["decw"], pk["decb"])

    return logits_p[:, :, :O], hnew_p[:, :, :H]


def char_rnn_forward(inp, hidden, pk):
    """Exact CharRNN.forward API: inp (B,) int tokens, hidden (L, B, H)."""
    ids = inp.astype(jnp.int32).reshape(1, -1)
    logits, h_new = char_rnn_forward_seq(ids, hidden, pk)
    return logits[0], h_new


# ----------------------------------------------------------------------------- reference
def _ref_forward(inp, hidden, params):
    """Pure-JAX reference matching PyTorch CharRNN.forward (eval mode), one step."""
    H = params["emb"].shape[1]
    x = params["emb"][inp]                                          # (B, H)

    def cell(x_in, h_in, wih, whh, bih, bhh):
        gi = x_in @ wih.T + bih
        gh = h_in @ whh.T + bhh
        r = jax.nn.sigmoid(gi[:, :H] + gh[:, :H])
        z = jax.nn.sigmoid(gi[:, H:2 * H] + gh[:, H:2 * H])
        n = jnp.tanh(gi[:, 2 * H:] + r * gh[:, 2 * H:])
        return (1.0 - z) * n + z * h_in

    h1 = cell(x, hidden[0], params["w_ih_l0"], params["w_hh_l0"],
              params["b_ih_l0"], params["b_hh_l0"])
    h2 = cell(h1, hidden[1], params["w_ih_l1"], params["w_hh_l1"],
              params["b_ih_l1"], params["b_hh_l1"])
    out = h2 @ params["dec_w"].T + params["dec_b"]
    return out, jnp.stack([h1, h2])


def init_params(key, input_size, hidden_size, output_size):
    ks = jax.random.split(key, 12)
    s = 1.0 / jnp.sqrt(hidden_size)
    u = lambda k, shape: jax.random.uniform(k, shape, jnp.float32, -s, s)
    return {
        "emb":     jax.random.normal(ks[0], (input_size, hidden_size), jnp.float32),
        "w_ih_l0": u(ks[1], (3 * hidden_size, hidden_size)),
        "w_hh_l0": u(ks[2], (3 * hidden_size, hidden_size)),
        "b_ih_l0": u(ks[3], (3 * hidden_size,)),
        "b_hh_l0": u(ks[4], (3 * hidden_size,)),
        "w_ih_l1": u(ks[5], (3 * hidden_size, hidden_size)),
        "w_hh_l1": u(ks[6], (3 * hidden_size, hidden_size)),
        "b_ih_l1": u(ks[7], (3 * hidden_size,)),
        "b_hh_l1": u(ks[8], (3 * hidden_size,)),
        "dec_w":   u(ks[9], (output_size, hidden_size)),
        "dec_b":   u(ks[10], (output_size,)),
    }


if __name__ == "__main__":
    input_size = 50     # vocab size
    hidden_size = 32
    output_size = 50
    n_layers = 2
    batch = 8           # 8 rows = one full sublane tile
    seq_len = 8         # whole sequence processed in ONE pallas_call

    key = jax.random.PRNGKey(0)
    kp, ki = jax.random.split(key)
    params = init_params(kp, input_size, hidden_size, output_size)
    packed = pack_params(params, hidden_size)

    ids = jax.random.randint(ki, (seq_len, batch), 0, input_size, dtype=jnp.int32)
    hidden = jnp.zeros((n_layers, batch, hidden_size), jnp.float32)   # init_hidden

    logits, h_new = char_rnn_forward_seq(ids, hidden, packed)
    logits = jax.block_until_ready(logits)
    h_new = jax.block_until_ready(h_new)

    # Reference: run the single-step reference T times (teacher forcing).
    ref_h = hidden
    ref_steps = []
    for t in range(seq_len):
        o, ref_h = _ref_forward(ids[t], ref_h, params)
        ref_steps.append(o)
    ref_logits = jnp.stack(ref_steps)

    assert logits.shape == (seq_len, batch, output_size)
    assert h_new.shape == (n_layers, batch, hidden_size)
    assert jnp.allclose(logits, ref_logits, atol=1e-4, rtol=1e-4), \
        float(jnp.max(jnp.abs(logits - ref_logits)))
    assert jnp.allclose(h_new, ref_h, atol=1e-4, rtol=1e-4), \
        float(jnp.max(jnp.abs(h_new - ref_h)))

    # Single-step API parity with CharRNN.forward.
    out1, h1 = char_rnn_forward(ids[0], hidden, packed)
    out1 = jax.block_until_ready(out1)
    ro, rh = _ref_forward(ids[0], hidden, params)
    assert jnp.allclose(out1, ro, atol=1e-4, rtol=1e-4)
    assert jnp.allclose(h1, rh, atol=1e-4, rtol=1e-4)

    print("KERNEL_OK")
</pallas_src>

<mosaic_0001>
module attributes {stable_mosaic.version = 11 : i64} {
  func.func @charrnn_seq_kernel(%arg0: i32, %arg1: memref<8x8xi32, #tpu.memory_space<smem>>, %arg2: memref<56x128xf32, #tpu.memory_space<vmem>>, %arg3: memref<2x8x128xf32, #tpu.memory_space<vmem>>, %arg4: memref<128x384xf32, #tpu.memory_space<vmem>>, %arg5: memref<128x384xf32, #tpu.memory_space<vmem>>, %arg6: memref<1x384xf32, #tpu.memory_space<vmem>>, %arg7: memref<1x128xf32, #tpu.memory_space<vmem>>, %arg8: memref<128x384xf32, #tpu.memory_space<vmem>>, %arg9: memref<128x384xf32, #tpu.memory_space<vmem>>, %arg10: memref<1x384xf32, #tpu.memory_space<vmem>>, %arg11: memref<1x128xf32, #tpu.memory_space<vmem>>, %arg12: memref<128x128xf32, #tpu.memory_space<vmem>>, %arg13: memref<1x128xf32, #tpu.memory_space<vmem>>, %arg14: memref<1x8x128xf32, #tpu.memory_space<vmem>>, %arg15: memref<2x8x128xf32, #tpu.memory_space<vmem>>) attributes {dimension_semantics = [#tpu.dimension_semantics<arbitrary>], iteration_bounds = array<i64: 8>, scalar_prefetch = 1 : i64, scratch_operands = 0 : i64, tpu.core_type = #tpu.core_type<tc>, window_params = [{pipeline_mode = #tpu.pipeline_mode<synchronous>, transform_indices = @transform_0, window_bounds = array<i64: 56, 128>}, {pipeline_mode = #tpu.pipeline_mode<synchronous>, transform_indices = @transform_1, window_bounds = array<i64: 2, 8, 128>}, {pipeline_mode = #tpu.pipeline_mode<synchronous>, transform_indices = @transform_2, window_bounds = array<i64: 128, 384>}, {pipeline_mode = #tpu.pipeline_mode<synchronous>, transform_indices = @transform_3, window_bounds = array<i64: 128, 384>}, {pipeline_mode = #tpu.pipeline_mode<synchronous>, transform_indices = @transform_4, window_bounds = array<i64: 1, 384>}, {pipeline_mode = #tpu.pipeline_mode<synchronous>, transform_indices = @transform_5, window_bounds = array<i64: 1, 128>}, {pipeline_mode = #tpu.pipeline_mode<synchronous>, transform_indices = @transform_6, window_bounds = array<i64: 128, 384>}, {pipeline_mode = #tpu.pipeline_mode<synchronous>, transform_indices = @transform_7, window_bounds = array<i64: 128, 384>}, {pipeline_mode = #tpu.pipeline_mode<synchronous>, transform_indices = @transform_8, window_bounds = array<i64: 1, 384>}, {pipeline_mode = #tpu.pipeline_mode<synchronous>, transform_indices = @transform_9, window_bounds = array<i64: 1, 128>}, {pipeline_mode = #tpu.pipeline_mode<synchronous>, transform_indices = @transform_10, window_bounds = array<i64: 128, 128>}, {pipeline_mode = #tpu.pipeline_mode<synchronous>, transform_indices = @transform_11, window_bounds = array<i64: 1, 128>}, {transform_indices = @transform_12, window_bounds = array<i64: 1, 8, 128>}, {pipeline_mode = #tpu.pipeline_mode<synchronous>, transform_indices = @transform_13, window_bounds = array<i64: 2, 8, 128>}]} {
    %c0_i32 = arith.constant 0 : i32
    %0 = arith.cmpi eq, %arg0, %c0_i32 : i32
    %1 = arith.extui %0 : i1 to i32
    %c0_i32_0 = arith.constant 0 : i32
    %2 = arith.cmpi ne, %1, %c0_i32_0 : i32
    scf.if %2 {
      %c0_54 = arith.constant 0 : index
      %c0_55 = arith.constant 0 : index
      %c0_56 = arith.constant 0 : index
      %126 = vector.load %arg3[%c0_54, %c0_55, %c0_56] : memref<2x8x128xf32, #tpu.memory_space<vmem>>, vector<2x8x128xf32>
      %c0_57 = arith.constant 0 : index
      %c0_58 = arith.constant 0 : index
      %c0_59 = arith.constant 0 : index
      %127 = vector.load %arg15[%c0_57, %c0_58, %c0_59] : memref<2x8x128xf32, #tpu.memory_space<vmem>>, vector<2x8x128xf32>
      tpu.vector_store %arg15[%c0_57, %c0_58, %c0_59], %126 {strides = array<i32>} : memref<2x8x128xf32, #tpu.memory_space<vmem>>, vector<2x8x128xf32>,
    } else {
    }
    %3 = arith.index_cast %arg0 : i32 to index
    %c0 = arith.constant 0 : index
    %4 = memref.load %arg1[%3, %c0] : memref<8x8xi32, #tpu.memory_space<smem>>
    %5 = arith.index_cast %4 : i32 to index
    %c0_1 = arith.constant 0 : index
    %6 = vector.load %arg2[%5, %c0_1] : memref<56x128xf32, #tpu.memory_space<vmem>>, vector<1x128xf32>
    %7 = arith.index_cast %arg0 : i32 to index
    %c1 = arith.constant 1 : index
    %8 = memref.load %arg1[%7, %c1] : memref<8x8xi32, #tpu.memory_space<smem>>
    %9 = arith.index_cast %8 : i32 to index
    %c0_2 = arith.constant 0 : index
    %10 = vector.load %arg2[%9, %c0_2] : memref<56x128xf32, #tpu.memory_space<vmem>>, vector<1x128xf32>
    %11 = arith.index_cast %arg0 : i32 to index
    %c2 = arith.constant 2 : index
    %12 = memref.load %arg1[%11, %c2] : memref<8x8xi32, #tpu.memory_space<smem>>
    %13 = arith.index_cast %12 : i32 to index
    %c0_3 = arith.constant 0 : index
    %14 = vector.load %arg2[%13, %c0_3] : memref<56x128xf32, #tpu.memory_space<vmem>>, vector<1x128xf32>
    %15 = arith.index_cast %arg0 : i32 to index
    %c3 = arith.constant 3 : index
    %16 = memref.load %arg1[%15, %c3] : memref<8x8xi32, #tpu.memory_space<smem>>
    %17 = arith.index_cast %16 : i32 to index
    %c0_4 = arith.constant 0 : index
    %18 = vector.load %arg2[%17, %c0_4] : memref<56x128xf32, #tpu.memory_space<vmem>>, vector<1x128xf32>
    %19 = arith.index_cast %arg0 : i32 to index
    %c4 = arith.constant 4 : index
    %20 = memref.load %arg1[%19, %c4] : memref<8x8xi32, #tpu.memory_space<smem>>
    %21 = arith.index_cast %20 : i32 to index
    %c0_5 = arith.constant 0 : index
    %22 = vector.load %arg2[%21, %c0_5] : memref<56x128xf32, #tpu.memory_space<vmem>>, vector<1x128xf32>
    %23 = arith.index_cast %arg0 : i32 to index
    %c5 = arith.constant 5 : index
    %24 = memref.load %arg1[%23, %c5] : memref<8x8xi32, #tpu.memory_space<smem>>
    %25 = arith.index_cast %24 : i32 to index
    %c0_6 = arith.constant 0 : index
    %26 = vector.load %arg2[%25, %c0_6] : memref<56x128xf32, #tpu.memory_space<vmem>>, vector<1x128xf32>
    %27 = arith.index_cast %arg0 : i32 to index
    %c6 = arith.constant 6 : index
    %28 = memref.load %arg1[%27, %c6] : memref<8x8xi32, #tpu.memory_space<smem>>
    %29 = arith.index_cast %28 : i32 to index
    %c0_7 = arith.constant 0 : index
    %30 = vector.load %arg2[%29, %c0_7] : memref<56x128xf32, #tpu.memory_space<vmem>>, vector<1x128xf32>
    %31 = arith.index_cast %arg0 : i32 to index
    %c7 = arith.constant 7 : index
    %32 = memref.load %arg1[%31, %c7] : memref<8x8xi32, #tpu.memory_space<smem>>
    %33 = arith.index_cast %32 : i32 to index
    %c0_8 = arith.constant 0 : index
    %34 = vector.load %arg2[%33, %c0_8] : memref<56x128xf32, #tpu.memory_space<vmem>>, vector<1x128xf32>
    %35 = tpu.concatenate %6, %10, %14, %18, %22, %26, %30, %34 in 0 : vector<1x128xf32>, vector<1x128xf32>, vector<1x128xf32>, vector<1x128xf32>, vector<1x128xf32>, vector<1x128xf32>, vector<1x128xf32>, vector<1x128xf32> -> vector<8x128xf32>
    %c0_9 = arith.constant 0 : index
    %c0_10 = arith.constant 0 : index
    %c0_11 = arith.constant 0 : index
    %36 = vector.load %arg15[%c0_9, %c0_10, %c0_11] : memref<2x8x128xf32, #tpu.memory_space<vmem>>, vector<1x8x128xf32>
    %37 = vector.shape_cast %36 : vector<1x8x128xf32> to vector<8x128xf32>
    %c1_12 = arith.constant 1 : index
    %c0_13 = arith.constant 0 : index
    %c0_14 = arith.constant 0 : index
    %38 = vector.load %arg15[%c1_12, %c0_13, %c0_14] : memref<2x8x128xf32, #tpu.memory_space<vmem>>, vector<1x8x128xf32>
    %39 = vector.shape_cast %38 : vector<1x8x128xf32> to vector<8x128xf32>
    %c0_15 = arith.constant 0 : index
    %c0_16 = arith.constant 0 : index
    %40 = vector.load %arg4[%c0_15, %c0_16] : memref<128x384xf32, #tpu.memory_space<vmem>>, vector<128x384xf32>
    %c0_17 = arith.constant 0 : index
    %c0_18 = arith.constant 0 : index
    %41 = vector.load %arg5[%c0_17, %c0_18] : memref<128x384xf32, #tpu.memory_space<vmem>>, vector<128x384xf32>
    %c0_19 = arith.constant 0 : index
    %c0_20 = arith.constant 0 : index
    %42 = vector.load %arg6[%c0_19, %c0_20] : memref<1x384xf32, #tpu.memory_space<vmem>>, vector<1x384xf32>
    %c0_21 = arith.constant 0 : index
    %c0_22 = arith.constant 0 : index
    %43 = vector.load %arg7[%c0_21, %c0_22] : memref<1x128xf32, #tpu.memory_space<vmem>>, vector<1x128xf32>
    %cst = arith.constant dense<0.000000e+00> : vector<8x384xf32>
    %44 = tpu.matmul %35, %40, %cst {dimension_numbers = #tpu.dot_dimension_numbers<[1], [0], [0], [1], [0, 0, 1, 1], [], []>} : vector<8x128xf32>, vector<128x384xf32>, vector<8x384xf32> -> vector<8x384xf32>
    %45 = vector.broadcast %42 : vector<1x384xf32> to vector<8x384xf32>
    %46 = arith.addf %44, %45 : vector<8x384xf32>
    %cst_23 = arith.constant dense<0.000000e+00> : vector<8x384xf32>
    %47 = tpu.matmul %37, %41, %cst_23 {dimension_numbers = #tpu.dot_dimension_numbers<[1], [0], [0], [1], [0, 0, 1, 1], [], []>} : vector<8x128xf32>, vector<128x384xf32>, vector<8x384xf32> -> vector<8x384xf32>
    %48 = vector.extract_strided_slice %46 {offsets = [0, 0], sizes = [8, 128], strides = [1, 1]} : vector<8x384xf32> to vector<8x128xf32>
    %49 = vector.extract_strided_slice %47 {offsets = [0, 0], sizes = [8, 128], strides = [1, 1]} : vector<8x384xf32> to vector<8x128xf32>
    %50 = arith.addf %48, %49 : vector<8x128xf32>
    %51 = arith.negf %50 : vector<8x128xf32>
    %52 = math.exp %51 : vector<8x128xf32>
    %cst_24 = arith.constant 1.000000e+00 : f32
    %53 = vector.broadcast %cst_24 : f32 to vector<8x128xf32>
    %54 = arith.addf %53, %52 : vector<8x128xf32>
    %55 = arith.divf %53, %54 : vector<8x128xf32>
    %56 = vector.extract_strided_slice %46 {offsets = [0, 128], sizes = [8, 128], strides = [1, 1]} : vector<8x384xf32> to vector<8x128xf32>
    %57 = vector.extract_strided_slice %47 {offsets = [0, 128], sizes = [8, 128], strides = [1, 1]} : vector<8x384xf32> to vector<8x128xf32>
    %58 = arith.addf %56, %57 : vector<8x128xf32>
    %59 = arith.negf %58 : vector<8x128xf32>
    %60 = math.exp %59 : vector<8x128xf32>
    %cst_25 = arith.constant 1.000000e+00 : f32
    %61 = vector.broadcast %cst_25 : f32 to vector<8x128xf32>
    %62 = arith.addf %61, %60 : vector<8x128xf32>
    %63 = arith.divf %61, %62 : vector<8x128xf32>
    %64 = vector.extract_strided_slice %46 {offsets = [0, 256], sizes = [8, 128], strides = [1, 1]} : vector<8x384xf32> to vector<8x128xf32>
    %65 = vector.extract_strided_slice %47 {offsets = [0, 256], sizes = [8, 128], strides = [1, 1]} : vector<8x384xf32> to vector<8x128xf32>
    %66 = vector.broadcast %43 : vector<1x128xf32> to vector<8x128xf32>
    %67 = arith.addf %65, %66 : vector<8x128xf32>
    %68 = arith.mulf %55, %67 : vector<8x128xf32>
    %69 = arith.addf %64, %68 : vector<8x128xf32>
    %70 = math.tanh %69 : vector<8x128xf32>
    %cst_26 = arith.constant 1.000000e+00 : f32
    %71 = vector.broadcast %cst_26 : f32 to vector<8x128xf32>
    %72 = arith.subf %71, %63 : vector<8x128xf32>
    %73 = arith.mulf %72, %70 : vector<8x128xf32>
    %74 = arith.mulf %63, %37 : vector<8x128xf32>
    %75 = arith.addf %73, %74 : vector<8x128xf32>
    %c0_27 = arith.constant 0 : index
    %c0_28 = arith.constant 0 : index
    %76 = vector.load %arg8[%c0_27, %c0_28] : memref<128x384xf32, #tpu.memory_space<vmem>>, vector<128x384xf32>
    %c0_29 = arith.constant 0 : index
    %c0_30 = arith.constant 0 : index
    %77 = vector.load %arg9[%c0_29, %c0_30] : memref<128x384xf32, #tpu.memory_space<vmem>>, vector<128x384xf32>
    %c0_31 = arith.constant 0 : index
    %c0_32 = arith.constant 0 : index
    %78 = vector.load %arg10[%c0_31, %c0_32] : memref<1x384xf32, #tpu.memory_space<vmem>>, vector<1x384xf32>
    %c0_33 = arith.constant 0 : index
    %c0_34 = arith.constant 0 : index
    %79 = vector.load %arg11[%c0_33, %c0_34] : memref<1x128xf32, #tpu.memory_space<vmem>>, vector<1x128xf32>
    %cst_35 = arith.constant dense<0.000000e+00> : vector<8x384xf32>
    %80 = tpu.matmul %75, %76, %cst_35 {dimension_numbers = #tpu.dot_dimension_numbers<[1], [0], [0], [1], [0, 0, 1, 1], [], []>} : vector<8x128xf32>, vector<128x384xf32>, vector<8x384xf32> -> vector<8x384xf32>
    %81 = vector.broadcast %78 : vector<1x384xf32> to vector<8x384xf32>
    %82 = arith.addf %80, %81 : vector<8x384xf32>
    %cst_36 = arith.constant dense<0.000000e+00> : vector<8x384xf32>
    %83 = tpu.matmul %39, %77, %cst_36 {dimension_numbers = #tpu.dot_dimension_numbers<[1], [0], [0], [1], [0, 0, 1, 1], [], []>} : vector<8x128xf32>, vector<128x384xf32>, vector<8x384xf32> -> vector<8x384xf32>
    %84 = vector.extract_strided_slice %82 {offsets = [0, 0], sizes = [8, 128], strides = [1, 1]} : vector<8x384xf32> to vector<8x128xf32>
    %85 = vector.extract_strided_slice %83 {offsets = [0, 0], sizes = [8, 128], strides = [1, 1]} : vector<8x384xf32> to vector<8x128xf32>
    %86 = arith.addf %84, %85 : vector<8x128xf32>
    %87 = arith.negf %86 : vector<8x128xf32>
    %88 = math.exp %87 : vector<8x128xf32>
    %cst_37 = arith.constant 1.000000e+00 : f32
    %89 = vector.broadcast %cst_37 : f32 to vector<8x128xf32>
    %90 = arith.addf %89, %88 : vector<8x128xf32>
    %91 = arith.divf %89, %90 : vector<8x128xf32>
    %92 = vector.extract_strided_slice %82 {offsets = [0, 128], sizes = [8, 128], strides = [1, 1]} : vector<8x384xf32> to vector<8x128xf32>
    %93 = vector.extract_strided_slice %83 {offsets = [0, 128], sizes = [8, 128], strides = [1, 1]} : vector<8x384xf32> to vector<8x128xf32>
    %94 = arith.addf %92, %93 : vector<8x128xf32>
    %95 = arith.negf %94 : vector<8x128xf32>
    %96 = math.exp %95 : vector<8x128xf32>
    %cst_38 = arith.constant 1.000000e+00 : f32
    %97 = vector.broadcast %cst_38 : f32 to vector<8x128xf32>
    %98 = arith.addf %97, %96 : vector<8x128xf32>
    %99 = arith.divf %97, %98 : vector<8x128xf32>
    %100 = vector.extract_strided_slice %82 {offsets = [0, 256], sizes = [8, 128], strides = [1, 1]} : vector<8x384xf32> to vector<8x128xf32>
    %101 = vector.extract_strided_slice %83 {offsets = [0, 256], sizes = [8, 128], strides = [1, 1]} : vector<8x384xf32> to vector<8x128xf32>
    %102 = vector.broadcast %79 : vector<1x128xf32> to vector<8x128xf32>
    %103 = arith.addf %101, %102 : vector<8x128xf32>
    %104 = arith.mulf %91, %103 : vector<8x128xf32>
    %105 = arith.addf %100, %104 : vector<8x128xf32>
    %106 = math.tanh %105 : vector<8x128xf32>
    %cst_39 = arith.constant 1.000000e+00 : f32
    %107 = vector.broadcast %cst_39 : f32 to vector<8x128xf32>
    %108 = arith.subf %107, %99 : vector<8x128xf32>
    %109 = arith.mulf %108, %106 : vector<8x128xf32>
    %110 = arith.mulf %99, %39 : vector<8x128xf32>
    %111 = arith.addf %109, %110 : vector<8x128xf32>
    %c0_40 = arith.constant 0 : index
    %c0_41 = arith.constant 0 : index
    %112 = vector.load %arg12[%c0_40, %c0_41] : memref<128x128xf32, #tpu.memory_space<vmem>>, vector<128x128xf32>
    %cst_42 = arith.constant dense<0.000000e+00> : vector<8x128xf32>
    %113 = tpu.matmul %111, %112, %cst_42 {dimension_numbers = #tpu.dot_dimension_numbers<[1], [0], [0], [1], [0, 0, 1, 1], [], []>} : vector<8x128xf32>, vector<128x128xf32>, vector<8x128xf32> -> vector<8x128xf32>
    %c0_43 = arith.constant 0 : index
    %c0_44 = arith.constant 0 : index
    %114 = vector.load %arg13[%c0_43, %c0_44] : memref<1x128xf32, #tpu.memory_space<vmem>>, vector<1x128xf32>
    %115 = vector.broadcast %114 : vector<1x128xf32> to vector<8x128xf32>
    %116 = arith.addf %113, %115 : vector<8x128xf32>
    %c0_45 = arith.constant 0 : index
    %c0_46 = arith.constant 0 : index
    %c0_47 = arith.constant 0 : index
    %117 = vector.load %arg14[%c0_45, %c0_46, %c0_47] : memref<1x8x128xf32, #tpu.memory_space<vmem>>, vector<1x8x128xf32>
    %118 = vector.shape_cast %117 : vector<1x8x128xf32> to vector<8x128xf32>
    %119 = vector.shape_cast %116 : vector<8x128xf32> to vector<1x8x128xf32>
    tpu.vector_store %arg14[%c0_45, %c0_46, %c0_47], %119 {strides = array<i32>} : memref<1x8x128xf32, #tpu.memory_space<vmem>>, vector<1x8x128xf32>,
    %c0_48 = arith.constant 0 : index
    %c0_49 = arith.constant 0 : index
    %c0_50 = arith.constant 0 : index
    %120 = vector.load %arg15[%c0_48, %c0_49, %c0_50] : memref<2x8x128xf32, #tpu.memory_space<vmem>>, vector<1x8x128xf32>
    %121 = vector.shape_cast %120 : vector<1x8x128xf32> to vector<8x128xf32>
    %122 = vector.shape_cast %75 : vector<8x128xf32> to vector<1x8x128xf32>
    tpu.vector_store %arg15[%c0_48, %c0_49, %c0_50], %122 {strides = array<i32>} : memref<2x8x128xf32, #tpu.memory_space<vmem>>, vector<1x8x128xf32>,
    %c1_51 = arith.constant 1 : index
    %c0_52 = arith.constant 0 : index
    %c0_53 = arith.constant 0 : index
    %123 = vector.load %arg15[%c1_51, %c0_52, %c0_53] : memref<2x8x128xf32, #tpu.memory_space<vmem>>, vector<1x8x128xf32>
    %124 = vector.shape_cast %123 : vector<1x8x128xf32> to vector<8x128xf32>
    %125 = vector.shape_cast %111 : vector<8x128xf32> to vector<1x8x128xf32>
    tpu.vector_store %arg15[%c1_51, %c0_52, %c0_53], %125 {strides = array<i32>} : memref<2x8x128xf32, #tpu.memory_space<vmem>>, vector<1x8x128xf32>,
    return
  }
  func.func @transform_0(%arg0: i32, %arg1: memref<8x8xi32, #tpu.memory_space<smem>>) -> (i32, i32) {
    %c0_i32 = arith.constant 0 : i32
    %c0_i32_0 = arith.constant 0 : i32
    %c0_i32_1 = arith.constant 0 : i32
    return %c0_i32, %c0_i32_0 : i32, i32
  }
  func.func @transform_1(%arg0: i32, %arg1: memref<8x8xi32, #tpu.memory_space<smem>>) -> (i32, i32, i32) {
    %c0_i32 = arith.constant 0 : i32
    %c0_i32_0 = arith.constant 0 : i32
    %c0_i32_1 = arith.constant 0 : i32
    %c0_i32_2 = arith.constant 0 : i32
    return %c0_i32, %c0_i32_0, %c0_i32_1 : i32, i32, i32
  }
  func.func @transform_2(%arg0: i32, %arg1: memref<8x8xi32, #tpu.memory_space<smem>>) -> (i32, i32) {
    %c0_i32 = arith.constant 0 : i32
    %c0_i32_0 = arith.constant 0 : i32
    %c0_i32_1 = arith.constant 0 : i32
    return %c0_i32, %c0_i32_0 : i32, i32
  }
  func.func @transform_3(%arg0: i32, %arg1: memref<8x8xi32, #tpu.memory_space<smem>>) -> (i32, i32) {
    %c0_i32 = arith.constant 0 : i32
    %c0_i32_0 = arith.constant 0 : i32
    %c0_i32_1 = arith.constant 0 : i32
    return %c0_i32, %c0_i32_0 : i32, i32
  }
  func.func @transform_4(%arg0: i32, %arg1: memref<8x8xi32, #tpu.memory_space<smem>>) -> (i32, i32) {
    %c0_i32 = arith.constant 0 : i32
    %c0_i32_0 = arith.constant 0 : i32
    %c0_i32_1 = arith.constant 0 : i32
    return %c0_i32, %c0_i32_0 : i32, i32
  }
  func.func @transform_5(%arg0: i32, %arg1: memref<8x8xi32, #tpu.memory_space<smem>>) -> (i32, i32) {
    %c0_i32 = arith.constant 0 : i32
    %c0_i32_0 = arith.constant 0 : i32
    %c0_i32_1 = arith.constant 0 : i32
    return %c0_i32, %c0_i32_0 : i32, i32
  }
  func.func @transform_6(%arg0: i32, %arg1: memref<8x8xi32, #tpu.memory_space<smem>>) -> (i32, i32) {
    %c0_i32 = arith.constant 0 : i32
    %c0_i32_0 = arith.constant 0 : i32
    %c0_i32_1 = arith.constant 0 : i32
    return %c0_i32, %c0_i32_0 : i32, i32
  }
  func.func @transform_7(%arg0: i32, %arg1: memref<8x8xi32, #tpu.memory_space<smem>>) -> (i32, i32) {
    %c0_i32 = arith.constant 0 : i32
    %c0_i32_0 = arith.constant 0 : i32
    %c0_i32_1 = arith.constant 0 : i32
    return %c0_i32, %c0_i32_0 : i32, i32
  }
  func.func @transform_8(%arg0: i32, %arg1: memref<8x8xi32, #tpu.memory_space<smem>>) -> (i32, i32) {
    %c0_i32 = arith.constant 0 : i32
    %c0_i32_0 = arith.constant 0 : i32
    %c0_i32_1 = arith.constant 0 : i32
    return %c0_i32, %c0_i32_0 : i32, i32
  }
  func.func @transform_9(%arg0: i32, %arg1: memref<8x8xi32, #tpu.memory_space<smem>>) -> (i32, i32) {
    %c0_i32 = arith.constant 0 : i32
    %c0_i32_0 = arith.constant 0 : i32
    %c0_i32_1 = arith.constant 0 : i32
    return %c0_i32, %c0_i32_0 : i32, i32
  }
  func.func @transform_10(%arg0: i32, %arg1: memref<8x8xi32, #tpu.memory_space<smem>>) -> (i32, i32) {
    %c0_i32 = arith.constant 0 : i32
    %c0_i32_0 = arith.constant 0 : i32
    %c0_i32_1 = arith.constant 0 : i32
    return %c0_i32, %c0_i32_0 : i32, i32
  }
  func.func @transform_11(%arg0: i32, %arg1: memref<8x8xi32, #tpu.memory_space<smem>>) -> (i32, i32) {
    %c0_i32 = arith.constant 0 : i32
    %c0_i32_0 = arith.constant 0 : i32
    %c0_i32_1 = arith.constant 0 : i32
    return %c0_i32, %c0_i32_0 : i32, i32
  }
  func.func @transform_12(%arg0: i32, %arg1: memref<8x8xi32, #tpu.memory_space<smem>>) -> (i32, i32, i32) {
    %c0_i32 = arith.constant 0 : i32
    %c0_i32_0 = arith.constant 0 : i32
    %c0_i32_1 = arith.constant 0 : i32
    return %arg0, %c0_i32, %c0_i32_0 : i32, i32, i32
  }
  func.func @transform_13(%arg0: i32, %arg1: memref<8x8xi32, #tpu.memory_space<smem>>) -> (i32, i32, i32) {
    %c0_i32 = arith.constant 0 : i32
    %c0_i32_0 = arith.constant 0 : i32
    %c0_i32_1 = arith.constant 0 : i32
    %c0_i32_2 = arith.constant 0 : i32
    return %c0_i32, %c0_i32_0, %c0_i32_1 : i32, i32, i32
  }
}

</mosaic_0001>

<llo_original>
// kernel: tpu_custom_call.1
$region0: #{tpu_custom_call.1}
  #allocation0 [shape = 'u32[]', space=smem, size = 0x4, offset = 0x4, fixed_abs, tag = 'smem constant byte address 0x4 - core index']
  #allocation1 [shape = 'u32[144,128]{1,0:T(1,128)}', space=vmem, size = 0x12000, scoped, tag = 'internal scratch']
  #allocation2 [shape = 's32[1]{0}', space=sflag, size = 0x4, scoped, tag = 'scoped memory for tpu_custom_call.1']
  #allocation3 [shape = 'u8[4096]{0}', space=smem, size = 0x1000, scoped, tag = 'prefetched SMEM operand 0']
  %s0 = inlined_call_operand.hbm [shape: s32[8,8], index: 0, kind: input, shape index: {}]
  %s1 = inlined_call_operand.hbm [shape: f32[56,128], index: 1, kind: input, shape index: {}]
  %s2 = inlined_call_operand.hbm [shape: f32[2,8,128], index: 2, kind: input, shape index: {}]
  %s3 = inlined_call_operand.hbm [shape: f32[128,384], index: 3, kind: input, shape index: {}]
  %s4 = inlined_call_operand.hbm [shape: f32[128,384], index: 4, kind: input, shape index: {}]
  %s5 = inlined_call_operand.vmem [shape: f32[1,384], index: 5, kind: input, shape index: {}]
  %s6 = inlined_call_operand.vmem [shape: f32[1,128], index: 6, kind: input, shape index: {}]
  %s7 = inlined_call_operand.hbm [shape: f32[128,384], index: 7, kind: input, shape index: {}]
  %s8 = inlined_call_operand.hbm [shape: f32[128,384], index: 8, kind: input, shape index: {}]
  %s9 = inlined_call_operand.vmem [shape: f32[1,384], index: 9, kind: input, shape index: {}]
  %s10 = inlined_call_operand.vmem [shape: f32[1,128], index: 10, kind: input, shape index: {}]
  %s11 = inlined_call_operand.hbm [shape: f32[128,128], index: 11, kind: input, shape index: {}]
  %s12 = inlined_call_operand.vmem [shape: f32[1,128], index: 12, kind: input, shape index: {}]
  %s13 = inlined_call_operand.hbm [shape: f32[8,8,128], index: 13, kind: output, shape index: {0}]
  %s14 = inlined_call_operand.hbm [shape: f32[2,8,128], index: 14, kind: output, shape index: {1}]
  %15 = xla_tuple %s13, %s14
  %s16 = sld [smem:[#allocation0]]
  $region121: #{tpu_custom_call.1} parent=0
    _
  %s18 = ssub.s32 1, %s16
  %s19 = scalar_select 0, %s18, %s16
  %21 = dma.hbm_to_smem %s0, 128, [#allocation3], [#allocation2]
  %22 = dma.done [#allocation2], 128
  %23 = sfence
  $region1: #{tpu_custom_call.1} parent=0
    #allocation4 [shape = 'u8[28672]{0}', space=vmem, size = 0x7000, scoped, tag = 'input window, operand 1, single buffered']
    #allocation5 [shape = 's32[2]{0}', space=sflag, size = 0x8, scoped, tag = 'scoped memory for tpu_custom_call.1']
    #allocation6 [shape = 's32[2]{0}', space=sflag, size = 0x8, scoped, tag = 'scoped memory for tpu_custom_call.1']
    #allocation7 [shape = 'u8[8192]{0}', space=vmem, size = 0x2000, scoped, tag = 'input window, operand 2, single buffered']
    #allocation8 [shape = 's32[1]{0}', space=sflag, size = 0x4, scoped, tag = 'scoped memory for tpu_custom_call.1']
    #allocation9 [shape = 'u8[196608]{0}', space=vmem, size = 0x30000, scoped, tag = 'input window, operand 3, single buffered']
    #allocation10 [shape = 'u8[196608]{0}', space=vmem, size = 0x30000, scoped, tag = 'input window, operand 4, single buffered']
    #allocation11 [shape = 's32[1]{0}', space=sflag, size = 0x4, scoped, tag = 'scoped memory for tpu_custom_call.1']
    #allocation12 [shape = 'u8[196608]{0}', space=vmem, size = 0x30000, scoped, tag = 'input window, operand 7, single buffered']
    #allocation13 [shape = 'u8[196608]{0}', space=vmem, size = 0x30000, scoped, tag = 'input window, operand 8, single buffered']
    #allocation14 [shape = 's32[1]{0}', space=sflag, size = 0x4, scoped, tag = 'scoped memory for tpu_custom_call.1']
    #allocation15 [shape = 'u8[65536]{0}', space=vmem, size = 0x10000, scoped, tag = 'input window, operand 11, single buffered']
    #allocation16 [shape = 'u8[8192]{0}', space=vmem, size = 0x2000, scoped, tag = 'output window, operand 0']
    #allocation17 [shape = 'u8[8192]{0}', space=vmem, size = 0x2000, scoped, tag = 'output window, operand 1, single buffered']
    #allocation18 [shape = 's32[1]{0}', space=sflag, size = 0x4, scoped, tag = 'scoped memory for tpu_custom_call.1']
    %24 = vsyncpa [#allocation5], 0
    %25 = vsyncpa [#allocation8], 0
    %26 = vsyncpa [#allocation11], 0
    %27 = vsyncpa [#allocation14], 0
    %28 = vsyncpa [#allocation6], 0
    %s29 = scalar_lea.sflag [#allocation6], 1
    %30 = vsyncpa %s29, 0
    %31 = vsyncpa [#allocation18], 0
    loop: start=0, step=1, limit=10
    $region2: #{tpu_custom_call.1} parent=1 // loop_pre_header
      _
    $region3: #{tpu_custom_call.1} parent=1 // loop_header
      %s33 = sphi 0, %s37
      %p34 = scmp.ge.s32.totalorder %s33, 10
      %s41 = sphi 0, %s41
      %s43 = sphi 0, %s41
      %s44 = sphi 0, %s43
      %s58 = sphi 0, %s44
      %s62 = sphi 0, %s62
      %s64 = sphi 0, %s62
      %s65 = sphi 0, %s64
      %s79 = sphi 0, %s65
      %s83 = sphi 0, %s83
      %s85 = sphi 0, %s83
      %s86 = sphi 0, %s85
      %s100 = sphi 0, %s86
      %s104 = sphi 0, %s104
      %s106 = sphi 0, %s104
      %s107 = sphi 0, %s106
      %s121 = sphi 0, %s107
      %s125 = sphi 0, %s125
      %s127 = sphi 0, %s125
      %s128 = sphi 0, %s127
      %s142 = sphi 0, %s128
      %s146 = sphi 0, %s146
      %s148 = sphi 0, %s146
      %s149 = sphi 0, %s148
      %s163 = sphi 0, %s149
      %s167 = sphi 0, %s167
      %s169 = sphi 0, %s167
      %s170 = sphi 0, %s169
      %s184 = sphi 0, %s170
      %s188 = sphi 0, %s188
      %s190 = sphi 0, %s188
      %s191 = sphi 0, %s190
      %s205 = sphi 0, %s191
      %s209 = sphi 0, %s209
      %s211 = sphi 0, %s209
      %s212 = sphi 0, %s211
      %s226 = sphi 0, %s212
      %s230 = sphi 0, %s230
      %s232 = sphi 0, %s230
      %s233 = sphi 0, %s232
      %s247 = sphi 0, %s233
      %s251 = sphi 0, %s251
      %s253 = sphi 0, %s251
      %s254 = sphi 0, %s253
      %s268 = sphi 0, %s254
      %s272 = sphi 0, %s272
      %s274 = sphi 0, %s272
      %s275 = sphi 0, %s274
      %s289 = sphi 0, %s275
      %s295 = sphi 0, %s297
      %s298 = sphi 0, %s295
      %s299 = sphi 0, %s298
      %s315 = sphi 0, %s299
      %s319 = sphi 0, %s319
      %s321 = sphi 0, %s319
      %s322 = sphi 0, %s321
      %s336 = sphi 0, %s322
    $region4: #{tpu_custom_call.1} parent=1 // loop_header_branch
      %36 = sbr.rel (%p34) target = $region8
    $region5: #{tpu_custom_call.1} parent=1 // loop_body
      %s38 = ssub.s32 %s33, 1
      %s39 = ssub.s32 %s33, 2
      %s40 = sadd.s32 %s33, 1
      %s42 = sadd.s32 %s41, 1
      %p45 = scmp.eq.s32.totalorder %s33, 7
      %p46 = scmp.ne.s32.totalorder %s41, %s43
      %p47 = scmp.eq.s32.totalorder %s33, 0
      %p48 = por %p46, %p47
      %p49 = scmp.ne.s32.totalorder %s41, %s43
      %p50 = scmp.eq.s32.totalorder %s38, 7
      %p51 = por %p49, %p50
      %p52 = scmp.ne.s32.totalorder %s43, %s44
      %p53 = scmp.eq.s32.totalorder %s38, 0
      %p54 = por %p52, %p53
      %p55 = scmp.ne.s32.totalorder %s43, %s44
      %p56 = scmp.eq.s32.totalorder %s39, 7
      %p57 = por %p55, %p56
      %p59 = scmp.ne.s32.totalorder %s44, %s58
      %p60 = scmp.eq.s32.totalorder %s39, 0
      %p61 = por %p59, %p60
      %s63 = sadd.s32 %s62, 1
      %p66 = scmp.eq.s32.totalorder %s33, 7
      %p67 = scmp.ne.s32.totalorder %s62, %s64
      %p68 = scmp.eq.s32.totalorder %s33, 0
      %p69 = por %p67, %p68
      %p70 = scmp.ne.s32.totalorder %s62, %s64
      %p71 = scmp.eq.s32.totalorder %s38, 7
      %p72 = por %p70, %p71
      %p73 = scmp.ne.s32.totalorder %s64, %s65
      %p74 = scmp.eq.s32.totalorder %s38, 0
      %p75 = por %p73, %p74
      %p76 = scmp.ne.s32.totalorder %s64, %s65
      %p77 = scmp.eq.s32.totalorder %s39, 7
      %p78 = por %p76, %p77
      %p80 = scmp.ne.s32.totalorder %s65, %s79
      %p81 = scmp.eq.s32.totalorder %s39, 0
      %p82 = por %p80, %p81
      %s84 = sadd.s32 %s83, 1
      %p87 = scmp.eq.s32.totalorder %s33, 7
      %p88 = scmp.ne.s32.totalorder %s83, %s85
      %p89 = scmp.eq.s32.totalorder %s33, 0
      %p90 = por %p88, %p89
      %p91 = scmp.ne.s32.totalorder %s83, %s85
      %p92 = scmp.eq.s32.totalorder %s38, 7
      %p93 = por %p91, %p92
      %p94 = scmp.ne.s32.totalorder %s85, %s86
      %p95 = scmp.eq.s32.totalorder %s38, 0
      %p96 = por %p94, %p95
      %p97 = scmp.ne.s32.totalorder %s85, %s86
      %p98 = scmp.eq.s32.totalorder %s39, 7
      %p99 = por %p97, %p98
      %p101 = scmp.ne.s32.totalorder %s86, %s100
      %p102 = scmp.eq.s32.totalorder %s39, 0
      %p103 = por %p101, %p102
      %s105 = sadd.s32 %s104, 1
      %p108 = scmp.eq.s32.totalorder %s33, 7
      %p109 = scmp.ne.s32.totalorder %s104, %s106
      %p110 = scmp.eq.s32.totalorder %s33, 0
      %p111 = por %p109, %p110
      %p112 = scmp.ne.s32.totalorder %s104, %s106
      %p113 = scmp.eq.s32.totalorder %s38, 7
      %p114 = por %p112, %p113
      %p115 = scmp.ne.s32.totalorder %s106, %s107
      %p116 = scmp.eq.s32.totalorder %s38, 0
      %p117 = por %p115, %p116
      %p118 = scmp.ne.s32.totalorder %s106, %s107
      %p119 = scmp.eq.s32.totalorder %s39, 7
      %p120 = por %p118, %p119
      %p122 = scmp.ne.s32.totalorder %s107, %s121
      %p123 = scmp.eq.s32.totalorder %s39, 0
      %p124 = por %p122, %p123
      %s126 = sadd.s32 %s125, 1
      %p129 = scmp.eq.s32.totalorder %s33, 7
      %p130 = scmp.ne.s32.totalorder %s125, %s127
      %p131 = scmp.eq.s32.totalorder %s33, 0
      %p132 = por %p130, %p131
      %p133 = scmp.ne.s32.totalorder %s125, %s127
      %p134 = scmp.eq.s32.totalorder %s38, 7
      %p135 = por %p133, %p134
      %p136 = scmp.ne.s32.totalorder %s127, %s128
      %p137 = scmp.eq.s32.totalorder %s38, 0
      %p138 = por %p136, %p137
      %p139 = scmp.ne.s32.totalorder %s127, %s128
      %p140 = scmp.eq.s32.totalorder %s39, 7
      %p141 = por %p139, %p140
      %p143 = scmp.ne.s32.totalorder %s128, %s142
      %p144 = scmp.eq.s32.totalorder %s39, 0
      %p145 = por %p143, %p144
      %s147 = sadd.s32 %s146, 1
      %p150 = scmp.eq.s32.totalorder %s33, 7
      %p151 = scmp.ne.s32.totalorder %s146, %s148
      %p152 = scmp.eq.s32.totalorder %s33, 0
      %p153 = por %p151, %p152
      %p154 = scmp.ne.s32.totalorder %s146, %s148
      %p155 = scmp.eq.s32.totalorder %s38, 7
      %p156 = por %p154, %p155
      %p157 = scmp.ne.s32.totalorder %s148, %s149
      %p158 = scmp.eq.s32.totalorder %s38, 0
      %p159 = por %p157, %p158
      %p160 = scmp.ne.s32.totalorder %s148, %s149
      %p161 = scmp.eq.s32.totalorder %s39, 7
      %p162 = por %p160, %p161
      %p164 = scmp.ne.s32.totalorder %s149, %s163
      %p165 = scmp.eq.s32.totalorder %s39, 0
      %p166 = por %p164, %p165
      %s168 = sadd.s32 %s167, 1
      %p171 = scmp.eq.s32.totalorder %s33, 7
      %p172 = scmp.ne.s32.totalorder %s167, %s169
      %p173 = scmp.eq.s32.totalorder %s33, 0
      %p174 = por %p172, %p173
      %p175 = scmp.ne.s32.totalorder %s167, %s169
      %p176 = scmp.eq.s32.totalorder %s38, 7
      %p177 = por %p175, %p176
      %p178 = scmp.ne.s32.totalorder %s169, %s170
      %p179 = scmp.eq.s32.totalorder %s38, 0
      %p180 = por %p178, %p179
      %p181 = scmp.ne.s32.totalorder %s169, %s170
      %p182 = scmp.eq.s32.totalorder %s39, 7
      %p183 = por %p181, %p182
      %p185 = scmp.ne.s32.totalorder %s170, %s184
      %p186 = scmp.eq.s32.totalorder %s39, 0
      %p187 = por %p185, %p186
      %s189 = sadd.s32 %s188, 1
      %p192 = scmp.eq.s32.totalorder %s33, 7
      %p193 = scmp.ne.s32.totalorder %s188, %s190
      %p194 = scmp.eq.s32.totalorder %s33, 0
      %p195 = por %p193, %p194
      %p196 = scmp.ne.s32.totalorder %s188, %s190
      %p197 = scmp.eq.s32.totalorder %s38, 7
      %p198 = por %p196, %p197
      %p199 = scmp.ne.s32.totalorder %s190, %s191
      %p200 = scmp.eq.s32.totalorder %s38, 0
      %p201 = por %p199, %p200
      %p202 = scmp.ne.s32.totalorder %s190, %s191
      %p203 = scmp.eq.s32.totalorder %s39, 7
      %p204 = por %p202, %p203
      %p206 = scmp.ne.s32.totalorder %s191, %s205
      %p207 = scmp.eq.s32.totalorder %s39, 0
      %p208 = por %p206, %p207
      %s210 = sadd.s32 %s209, 1
      %p213 = scmp.eq.s32.totalorder %s33, 7
      %p214 = scmp.ne.s32.totalorder %s209, %s211
      %p215 = scmp.eq.s32.totalorder %s33, 0
      %p216 = por %p214, %p215
      %p217 = scmp.ne.s32.totalorder %s209, %s211
      %p218 = scmp.eq.s32.totalorder %s38, 7
      %p219 = por %p217, %p218
      %p220 = scmp.ne.s32.totalorder %s211, %s212
      %p221 = scmp.eq.s32.totalorder %s38, 0
      %p222 = por %p220, %p221
      %p223 = scmp.ne.s32.totalorder %s211, %s212
      %p224 = scmp.eq.s32.totalorder %s39, 7
      %p225 = por %p223, %p224
      %p227 = scmp.ne.s32.totalorder %s212, %s226
      %p228 = scmp.eq.s32.totalorder %s39, 0
      %p229 = por %p227, %p228
      %s231 = sadd.s32 %s230, 1
      %p234 = scmp.eq.s32.totalorder %s33, 7
      %p235 = scmp.ne.s32.totalorder %s230, %s232
      %p236 = scmp.eq.s32.totalorder %s33, 0
      %p237 = por %p235, %p236
      %p238 = scmp.ne.s32.totalorder %s230, %s232
      %p239 = scmp.eq.s32.totalorder %s38, 7
      %p240 = por %p238, %p239
      %p241 = scmp.ne.s32.totalorder %s232, %s233
      %p242 = scmp.eq.s32.totalorder %s38, 0
      %p243 = por %p241, %p242
      %p244 = scmp.ne.s32.totalorder %s232, %s233
      %p245 = scmp.eq.s32.totalorder %s39, 7
      %p246 = por %p244, %p245
      %p248 = scmp.ne.s32.totalorder %s233, %s247
      %p249 = scmp.eq.s32.totalorder %s39, 0
      %p250 = por %p248, %p249
      %s252 = sadd.s32 %s251, 1
      %p255 = scmp.eq.s32.totalorder %s33, 7
      %p256 = scmp.ne.s32.totalorder %s251, %s253
      %p257 = scmp.eq.s32.totalorder %s33, 0
      %p258 = por %p256, %p257
      %p259 = scmp.ne.s32.totalorder %s251, %s253
      %p260 = scmp.eq.s32.totalorder %s38, 7
      %p261 = por %p259, %p260
      %p262 = scmp.ne.s32.totalorder %s253, %s254
      %p263 = scmp.eq.s32.totalorder %s38, 0
      %p264 = por %p262, %p263
      %p265 = scmp.ne.s32.totalorder %s253, %s254
      %p266 = scmp.eq.s32.totalorder %s39, 7
      %p267 = por %p265, %p266
      %p269 = scmp.ne.s32.totalorder %s254, %s268
      %p270 = scmp.eq.s32.totalorder %s39, 0
      %p271 = por %p269, %p270
      %s273 = sadd.s32 %s272, 1
      %p276 = scmp.eq.s32.totalorder %s33, 7
      %p277 = scmp.ne.s32.totalorder %s272, %s274
      %p278 = scmp.eq.s32.totalorder %s33, 0
      %p279 = por %p277, %p278
      %p280 = scmp.ne.s32.totalorder %s272, %s274
      %p281 = scmp.eq.s32.totalorder %s38, 7
      %p282 = por %p280, %p281
      %p283 = scmp.ne.s32.totalorder %s274, %s275
      %p284 = scmp.eq.s32.totalorder %s38, 0
      %p285 = por %p283, %p284
      %p286 = scmp.ne.s32.totalorder %s274, %s275
      %p287 = scmp.eq.s32.totalorder %s39, 7
      %p288 = por %p286, %p287
      %p290 = scmp.ne.s32.totalorder %s275, %s289
      %p291 = scmp.eq.s32.totalorder %s39, 0
      %p292 = por %p290, %p291
      %s293 = ssub.s32 %s33, %s40
      %p294 = scmp.eq.s32.totalorder %s293, 0
      %s296 = sadd.s32 %s295, 1
      %s297 = scalar_select %p294, %s295, %s296
      %p300 = pneg %p294
      %p301 = scmp.eq.s32.totalorder %s33, 7
      %p302 = por %p300, %p301
      %p303 = scmp.ne.s32.totalorder %s295, %s298
      %p304 = scmp.eq.s32.totalorder %s33, 0
      %p305 = por %p303, %p304
      %p306 = scmp.ne.s32.totalorder %s295, %s298
      %p307 = scmp.eq.s32.totalorder %s38, 7
      %p308 = por %p306, %p307
      %p309 = scmp.ne.s32.totalorder %s298, %s299
      %p310 = scmp.eq.s32.totalorder %s38, 0
      %p311 = por %p309, %p310
      %p312 = scmp.ne.s32.totalorder %s298, %s299
      %p313 = scmp.eq.s32.totalorder %s39, 7
      %p314 = por %p312, %p313
      %p316 = scmp.ne.s32.totalorder %s299, %s315
      %p317 = scmp.eq.s32.totalorder %s39, 0
      %p318 = por %p316, %p317
      %s320 = sadd.s32 %s319, 1
      %p323 = scmp.eq.s32.totalorder %s33, 7
      %p324 = scmp.ne.s32.totalorder %s319, %s321
      %p325 = scmp.eq.s32.totalorder %s33, 0
      %p326 = por %p324, %p325
      %p327 = scmp.ne.s32.totalorder %s319, %s321
      %p328 = scmp.eq.s32.totalorder %s38, 7
      %p329 = por %p327, %p328
      %p330 = scmp.ne.s32.totalorder %s321, %s322
      %p331 = scmp.eq.s32.totalorder %s38, 0
      %p332 = por %p330, %p331
      %p333 = scmp.ne.s32.totalorder %s321, %s322
      %p334 = scmp.eq.s32.totalorder %s39, 7
      %p335 = por %p333, %p334
      %p337 = scmp.ne.s32.totalorder %s322, %s336
      %p338 = scmp.eq.s32.totalorder %s39, 0
      %p339 = por %p337, %p338
      %p340 = scmp.le.s32.totalorder 1, %s33
      %p341 = scmp.lt.s32.totalorder %s33, 9
      %p342 = pnand %p340, %p341
      %p343 = pneg %p342
      // Predicated region
      $region9: #{tpu_custom_call.1} parent=5 // pred_check
        _
      $region10: #{tpu_custom_call.1} parent=5 // pred_check_branch
        %345 = sbr.rel (%p342) target = $region12
      $region11: #{tpu_custom_call.1} parent=5 // pred_region
        %s346 = ssub.s32 %s33, 1
        // Predicated region
        $region13: #{tpu_custom_call.1} parent=11 // pred_check
          %p347 = pneg %p54
        $region14: #{tpu_custom_call.1} parent=11 // pred_check_branch
          %349 = sbr.rel (%p347) target = $region16
        $region15: #{tpu_custom_call.1} parent=11 // pred_region
          %s351 = ssub.s32 896, 896
          %352 = vsyncadd [#allocation5], %s351
          %s353 = sshll.u32 [#allocation4], 4
          %s354 = int_to_ptr.vmem [resolvable:$true] %s353
          %359 = dma.hbm_to_vmem [thread:$0]  %s1, 896, %s354, [#allocation5], 128, 128, 8
        $region16: #{tpu_custom_call.1} parent=11 // pred_fallthru
          _
        // Predicated region
        $region17: #{tpu_custom_call.1} parent=11 // pred_check
          %p360 = pneg %p75
        $region18: #{tpu_custom_call.1} parent=11 // pred_check_branch
          %362 = sbr.rel (%p360) target = $region20
        $region19: #{tpu_custom_call.1} parent=11 // pred_region
          %s364 = ssub.s32 256, 256
          %365 = vsyncadd [#allocation8], %s364
          %s366 = sshll.u32 [#allocation7], 4
          %s367 = int_to_ptr.vmem [resolvable:$true] %s366
          %372 = dma.hbm_to_vmem [thread:$0]  %s2, 256, %s367, [#allocation8], 128, 128, 8
        $region20: #{tpu_custom_call.1} parent=11 // pred_fallthru
          _
        // Predicated region
        $region21: #{tpu_custom_call.1} parent=11 // pred_check
          %p373 = pneg %p96
        $region22: #{tpu_custom_call.1} parent=11 // pred_check_branch
          %375 = sbr.rel (%p373) target = $region24
        $region23: #{tpu_custom_call.1} parent=11 // pred_region
          %s377 = ssub.s32 6144, 6144
          %378 = vsyncadd [#allocation8], %s377
          %s379 = sshll.u32 [#allocation9], 4
          %s380 = int_to_ptr.vmem [resolvable:$true] %s379
          %385 = dma.hbm_to_vmem [thread:$0]  %s3, 6144, %s380, [#allocation8], 384, 384, 24
        $region24: #{tpu_custom_call.1} parent=11 // pred_fallthru
          _
        // Predicated region
        $region25: #{tpu_custom_call.1} parent=11 // pred_check
          %p386 = pneg %p117
        $region26: #{tpu_custom_call.1} parent=11 // pred_check_branch
          %388 = sbr.rel (%p386) target = $region28
        $region27: #{tpu_custom_call.1} parent=11 // pred_region
          %s390 = ssub.s32 6144, 6144
          %391 = vsyncadd [#allocation11], %s390
          %s392 = sshll.u32 [#allocation10], 4
          %s393 = int_to_ptr.vmem [resolvable:$true] %s392
          %398 = dma.hbm_to_vmem [thread:$0]  %s4, 6144, %s393, [#allocation11], 384, 384, 24
        $region28: #{tpu_custom_call.1} parent=11 // pred_fallthru
          _
        // Predicated region
        $region29: #{tpu_custom_call.1} parent=11 // pred_check
          %p399 = pneg %p138
        $region30: #{tpu_custom_call.1} parent=11 // pred_check_branch
          %401 = sbr.rel (%p399) target = $region32
        $region31: #{tpu_custom_call.1} parent=11 // pred_region
          _
        $region32: #{tpu_custom_call.1} parent=11 // pred_fallthru
          _
        // Predicated region
        $region33: #{tpu_custom_call.1} parent=11 // pred_check
          %p402 = pneg %p159
        $region34: #{tpu_custom_call.1} parent=11 // pred_check_branch
          %404 = sbr.rel (%p402) target = $region36
        $region35: #{tpu_custom_call.1} parent=11 // pred_region
          _
        $region36: #{tpu_custom_call.1} parent=11 // pred_fallthru
          _
        // Predicated region
        $region37: #{tpu_custom_call.1} parent=11 // pred_check
          %p405 = pneg %p180
        $region38: #{tpu_custom_call.1} parent=11 // pred_check_branch
          %407 = sbr.rel (%p405) target = $region40
        $region39: #{tpu_custom_call.1} parent=11 // pred_region
          %s409 = ssub.s32 6144, 6144
          %410 = vsyncadd [#allocation11], %s409
          %s411 = sshll.u32 [#allocation12], 4
          %s412 = int_to_ptr.vmem [resolvable:$true] %s411
          %417 = dma.hbm_to_vmem [thread:$0]  %s7, 6144, %s412, [#allocation11], 384, 384, 24
        $region40: #{tpu_custom_call.1} parent=11 // pred_fallthru
          _
        // Predicated region
        $region41: #{tpu_custom_call.1} parent=11 // pred_check
          %p418 = pneg %p201
        $region42: #{tpu_custom_call.1} parent=11 // pred_check_branch
          %420 = sbr.rel (%p418) target = $region44
        $region43: #{tpu_custom_call.1} parent=11 // pred_region
          %s422 = ssub.s32 6144, 6144
          %423 = vsyncadd [#allocation14], %s422
          %s424 = sshll.u32 [#allocation13], 4
          %s425 = int_to_ptr.vmem [resolvable:$true] %s424
          %430 = dma.hbm_to_vmem [thread:$0]  %s8, 6144, %s425, [#allocation14], 384, 384, 24
        $region44: #{tpu_custom_call.1} parent=11 // pred_fallthru
          _
        // Predicated region
        $region45: #{tpu_custom_call.1} parent=11 // pred_check
          %p431 = pneg %p222
        $region46: #{tpu_custom_call.1} parent=11 // pred_check_branch
          %433 = sbr.rel (%p431) target = $region48
        $region47: #{tpu_custom_call.1} parent=11 // pred_region
          _
        $region48: #{tpu_custom_call.1} parent=11 // pred_fallthru
          _
        // Predicated region
        $region49: #{tpu_custom_call.1} parent=11 // pred_check
          %p434 = pneg %p243
        $region50: #{tpu_custom_call.1} parent=11 // pred_check_branch
          %436 = sbr.rel (%p434) target = $region52
        $region51: #{tpu_custom_call.1} parent=11 // pred_region
          _
        $region52: #{tpu_custom_call.1} parent=11 // pred_fallthru
          _
        // Predicated region
        $region53: #{tpu_custom_call.1} parent=11 // pred_check
          %p437 = pneg %p264
        $region54: #{tpu_custom_call.1} parent=11 // pred_check_branch
          %439 = sbr.rel (%p437) target = $region56
        $region55: #{tpu_custom_call.1} parent=11 // pred_region
          %s441 = ssub.s32 2048, 2048
          %442 = vsyncadd [#allocation14], %s441
          %s443 = sshll.u32 [#allocation15], 4
          %s444 = int_to_ptr.vmem [resolvable:$true] %s443
          %449 = dma.hbm_to_vmem [thread:$0]  %s11, 2048, %s444, [#allocation14], 128, 128, 8
        $region56: #{tpu_custom_call.1} parent=11 // pred_fallthru
          _
        // Predicated region
        $region57: #{tpu_custom_call.1} parent=11 // pred_check
          %p450 = pneg %p285
        $region58: #{tpu_custom_call.1} parent=11 // pred_check_branch
          %452 = sbr.rel (%p450) target = $region60
        $region59: #{tpu_custom_call.1} parent=11 // pred_region
          _
        $region60: #{tpu_custom_call.1} parent=11 // pred_fallthru
          _
      $region12: #{tpu_custom_call.1} parent=5 // pred_fallthru
        _
      %p453 = scmp.lt.s32.totalorder %s33, 8
      // Predicated region
      $region61: #{tpu_custom_call.1} parent=5 // pred_check
        %p454 = pneg %p453
      $region62: #{tpu_custom_call.1} parent=5 // pred_check_branch
        %456 = sbr.rel (%p454) target = $region64
      $region63: #{tpu_custom_call.1} parent=5 // pred_region
        _
      $region64: #{tpu_custom_call.1} parent=5 // pred_fallthru
        _
      %p457 = scmp.le.s32.totalorder 1, %s33
      %p458 = scmp.lt.s32.totalorder %s33, 9
      %p459 = pnand %p457, %p458
      %p460 = pneg %p459
      // Predicated region
      $region65: #{tpu_custom_call.1} parent=5 // pred_check
        _
      $region66: #{tpu_custom_call.1} parent=5 // pred_check_branch
        %462 = sbr.rel (%p459) target = $region68
      $region67: #{tpu_custom_call.1} parent=5 // pred_region
        %s463 = ssub.s32 %s33, 1
        // Predicated region
        $region69: #{tpu_custom_call.1} parent=67 // pred_check
          %p464 = pneg %p54
        $region70: #{tpu_custom_call.1} parent=67 // pred_check_branch
          %466 = sbr.rel (%p464) target = $region72
        $region71: #{tpu_custom_call.1} parent=67 // pred_region
          %467 = dma.done [#allocation5], 896
        $region72: #{tpu_custom_call.1} parent=67 // pred_fallthru
          _
        // Predicated region
        $region73: #{tpu_custom_call.1} parent=67 // pred_check
          %p468 = pneg %p75
        $region74: #{tpu_custom_call.1} parent=67 // pred_check_branch
          %470 = sbr.rel (%p468) target = $region76
        $region75: #{tpu_custom_call.1} parent=67 // pred_region
          %471 = dma.done [#allocation8], 256
        $region76: #{tpu_custom_call.1} parent=67 // pred_fallthru
          _
        // Predicated region
        $region77: #{tpu_custom_call.1} parent=67 // pred_check
          %p472 = pneg %p96
        $region78: #{tpu_custom_call.1} parent=67 // pred_check_branch
          %474 = sbr.rel (%p472) target = $region80
        $region79: #{tpu_custom_call.1} parent=67 // pred_region
          %475 = dma.done [#allocation8], 6144
        $region80: #{tpu_custom_call.1} parent=67 // pred_fallthru
          _
        // Predicated region
        $region81: #{tpu_custom_call.1} parent=67 // pred_check
          %p476 = pneg %p117
        $region82: #{tpu_custom_call.1} parent=67 // pred_check_branch
          %478 = sbr.rel (%p476) target = $region84
        $region83: #{tpu_custom_call.1} parent=67 // pred_region
          %479 = dma.done [#allocation11], 6144
        $region84: #{tpu_custom_call.1} parent=67 // pred_fallthru
          _
        // Predicated region
        $region85: #{tpu_custom_call.1} parent=67 // pred_check
          %p480 = pneg %p180
        $region86: #{tpu_custom_call.1} parent=67 // pred_check_branch
          %482 = sbr.rel (%p480) target = $region88
        $region87: #{tpu_custom_call.1} parent=67 // pred_region
          %483 = dma.done [#allocation11], 6144
        $region88: #{tpu_custom_call.1} parent=67 // pred_fallthru
          _
        // Predicated region
        $region89: #{tpu_custom_call.1} parent=67 // pred_check
          %p484 = pneg %p201
        $region90: #{tpu_custom_call.1} parent=67 // pred_check_branch
          %486 = sbr.rel (%p484) target = $region92
        $region91: #{tpu_custom_call.1} parent=67 // pred_region
          %487 = dma.done [#allocation14], 6144
        $region92: #{tpu_custom_call.1} parent=67 // pred_fallthru
          _
        // Predicated region
        $region93: #{tpu_custom_call.1} parent=67 // pred_check
          %p488 = pneg %p264
        $region94: #{tpu_custom_call.1} parent=67 // pred_check_branch
          %490 = sbr.rel (%p488) target = $region96
        $region95: #{tpu_custom_call.1} parent=67 // pred_region
          %491 = dma.done [#allocation14], 2048
        $region96: #{tpu_custom_call.1} parent=67 // pred_fallthru
          _
        %p492 = pneg %p54
        %p493 = pneg %p51
        %p494 = pneg %p75
        %p495 = pneg %p72
        %p496 = pneg %p96
        %p497 = pneg %p93
        %p498 = pneg %p117
        %p499 = pneg %p114
        %p500 = pneg %p138
        %p501 = pneg %p135
        %p502 = pneg %p159
        %p503 = pneg %p156
        %p504 = pneg %p180
        %p505 = pneg %p177
        %p506 = pneg %p201
        %p507 = pneg %p198
        %p508 = pneg %p222
        %p509 = pneg %p219
        %p510 = pneg %p243
        %p511 = pneg %p240
        %p512 = pneg %p264
        %p513 = pneg %p261
        %p514 = pneg %p285
        %p515 = pneg %p282
        %p516 = pneg %p311
        %p517 = pneg %p308
        %s518 = sand.u32 %s298, 1
        %s519 = scalar_lea.sflag [#allocation6], %s518
        %s520 = sand.u32 %s298, 1
        %s521 = smul.addr %s520, 8
        %s522 = scalar_lea.vmem [#allocation16], %s521
        %p523 = pneg %p332
        %p524 = pneg %p329
        %p525 = scmp.eq.s32.totalorder %s38, 0
        // Predicated region
        $region97: #{tpu_custom_call.1} parent=67 // pred_check
          %p526 = pneg %p525
        $region98: #{tpu_custom_call.1} parent=67 // pred_check_branch
          %528 = sbr.rel (%p526) target = $region100
        $region99: #{tpu_custom_call.1} parent=67 // pred_region
          %v529 = vld [vmem:[#allocation7] sm:$0xff]
          %v530 = vld [vmem:[#allocation7 + $0x8] sm:$0xff]
          %531 = vst [vmem:[#allocation17] sm:$0xff] %v529
          %532 = vst [vmem:[#allocation17 + $0x8] sm:$0xff] %v530
        $region100: #{tpu_custom_call.1} parent=67 // pred_fallthru
          _
        %s533 = smul.u32 %s38, 128
        %s534 = sld [smem:[#allocation3 + %s533]]
        %s535 = scalar_lea.vmem [#allocation4], %s534
        %v536 = vld [vmem:[%s535] sm:$0x1]
        %s537 = sadd.s32 %s533, 1
        %s538 = sld [smem:[#allocation3 + %s537]]
        %s539 = scalar_lea.vmem [#allocation4], %s538
        %v540 = vld [vmem:[%s539] sm:$0x1]
        %s541 = sadd.s32 %s533, 2
        %s542 = sld [smem:[#allocation3 + %s541]]
        %s543 = scalar_lea.vmem [#allocation4], %s542
        %v544 = vld [vmem:[%s543] sm:$0x1]
        %s545 = sadd.s32 %s533, 3
        %s546 = sld [smem:[#allocation3 + %s545]]
        %s547 = scalar_lea.vmem [#allocation4], %s546
        %v548 = vld [vmem:[%s547] sm:$0x1]
        %s549 = sadd.s32 %s533, 4
        %s550 = sld [smem:[#allocation3 + %s549]]
        %s551 = scalar_lea.vmem [#allocation4], %s550
        %v552 = vld [vmem:[%s551] sm:$0x1]
        %s553 = sadd.s32 %s533, 5
        %s554 = sld [smem:[#allocation3 + %s553]]
        %s555 = scalar_lea.vmem [#allocation4], %s554
        %v556 = vld [vmem:[%s555] sm:$0x1]
        %s557 = sadd.s32 %s533, 6
        %s558 = sld [smem:[#allocation3 + %s557]]
        %s559 = scalar_lea.vmem [#allocation4], %s558
        %v560 = vld [vmem:[%s559] sm:$0x1]
        %s561 = sadd.s32 %s533, 7
        %s562 = sld [smem:[#allocation3 + %s561]]
        %s563 = scalar_lea.vmem [#allocation4], %s562
        %v564 = vld [vmem:[%s563] sm:$0x1]
        %v566 = vrot.slane %v540, 7
        %v569 = vrot.slane %v544, 6
        %v572 = vrot.slane %v548, 5
        %v575 = vrot.slane %v552, 4
        %v578 = vrot.slane %v556, 3
        %v581 = vrot.slane %v560, 2
        %v584 = vrot.slane %v564, 1
        %vm586 = vcmask 1040384
        %v587 = vsel %vm586, %v536, %v566
        %vm588 = vcmask 1041408
        %v589 = vsel %vm588, %v587, %v569
        %vm590 = vcmask 1042432
        %v591 = vsel %vm590, %v589, %v572
        %vm592 = vcmask 1043456
        %v593 = vsel %vm592, %v591, %v575
        %vm594 = vcmask 1044480
        %v595 = vsel %vm594, %v593, %v578
        %vm596 = vcmask 1045504
        %v597 = vsel %vm596, %v595, %v581
        %vm598 = vcmask 1046528
        %v599 = vsel %vm598, %v597, %v584
        %v600 = vld [vmem:[#allocation17] sm:$0xff]
        %s601 = scalar_lea.vmem [#allocation17], 8
        %v602 = vld [vmem:[%s601] sm:$0xff]
        %v603 = vld [vmem:[#allocation9] sm:$0xff]
        %v604 = vld [vmem:[#allocation9 + $0x8] sm:$0xff]
        %v605 = vld [vmem:[#allocation9 + $0x10] sm:$0xff]
        %v606 = vld [vmem:[#allocation9 + $0x18] sm:$0xff]
        %v607 = vld [vmem:[#allocation9 + $0x20] sm:$0xff]
        %v608 = vld [vmem:[#allocation9 + $0x28] sm:$0xff]
        %v609 = vld [vmem:[#allocation9 + $0x30] sm:$0xff]
        %v610 = vld [vmem:[#allocation9 + $0x38] sm:$0xff]
        %v611 = vld [vmem:[#allocation9 + $0x40] sm:$0xff]
        %v612 = vld [vmem:[#allocation9 + $0x48] sm:$0xff]
        %v613 = vld [vmem:[#allocation9 + $0x50] sm:$0xff]
        %v614 = vld [vmem:[#allocation9 + $0x58] sm:$0xff]
        %v615 = vld [vmem:[#allocation9 + $0x60] sm:$0xff]
        %v616 = vld [vmem:[#allocation9 + $0x68] sm:$0xff]
        %v617 = vld [vmem:[#allocation9 + $0x70] sm:$0xff]
        %v618 = vld [vmem:[#allocation9 + $0x78] sm:$0xff]
        %v619 = vld [vmem:[#allocation9 + $0x80] sm:$0xff]
        %v620 = vld [vmem:[#allocation9 + $0x88] sm:$0xff]
        %v621 = vld [vmem:[#allocation9 + $0x90] sm:$0xff]
        %v622 = vld [vmem:[#allocation9 + $0x98] sm:$0xff]
        %v623 = vld [vmem:[#allocation9 + $0xa0] sm:$0xff]
        %v624 = vld [vmem:[#allocation9 + $0xa8] sm:$0xff]
        %v625 = vld [vmem:[#allocation9 + $0xb0] sm:$0xff]
        %v626 = vld [vmem:[#allocation9 + $0xb8] sm:$0xff]
        %v627 = vld [vmem:[#allocation9 + $0xc0] sm:$0xff]
        %v628 = vld [vmem:[#allocation9 + $0xc8] sm:$0xff]
        %v629 = vld [vmem:[#allocation9 + $0xd0] sm:$0xff]
        %v630 = vld [vmem:[#allocation9 + $0xd8] sm:$0xff]
        %v631 = vld [vmem:[#allocation9 + $0xe0] sm:$0xff]
        %v632 = vld [vmem:[#allocation9 + $0xe8] sm:$0xff]
        %v633 = vld [vmem:[#allocation9 + $0xf0] sm:$0xff]
        %v634 = vld [vmem:[#allocation9 + $0xf8] sm:$0xff]
        %v635 = vld [vmem:[#allocation9 + $0x100] sm:$0xff]
        %v636 = vld [vmem:[#allocation9 + $0x108] sm:$0xff]
        %v637 = vld [vmem:[#allocation9 + $0x110] sm:$0xff]
        %v638 = vld [vmem:[#allocation9 + $0x118] sm:$0xff]
        %v639 = vld [vmem:[#allocation9 + $0x120] sm:$0xff]
        %v640 = vld [vmem:[#allocation9 + $0x128] sm:$0xff]
        %v641 = vld [vmem:[#allocation9 + $0x130] sm:$0xff]
        %v642 = vld [vmem:[#allocation9 + $0x138] sm:$0xff]
        %v643 = vld [vmem:[#allocation9 + $0x140] sm:$0xff]
        %v644 = vld [vmem:[#allocation9 + $0x148] sm:$0xff]
        %v645 = vld [vmem:[#allocation9 + $0x150] sm:$0xff]
        %v646 = vld [vmem:[#allocation9 + $0x158] sm:$0xff]
        %v647 = vld [vmem:[#allocation9 + $0x160] sm:$0xff]
        %v648 = vld [vmem:[#allocation9 + $0x168] sm:$0xff]
        %v649 = vld [vmem:[#allocation9 + $0x170] sm:$0xff]
        %v650 = vld [vmem:[#allocation9 + $0x178] sm:$0xff]
        %v651 = vld [vmem:[#allocation10] sm:$0xff]
        %v652 = vld [vmem:[#allocation10 + $0x8] sm:$0xff]
        %v653 = vld [vmem:[#allocation10 + $0x10] sm:$0xff]
        %v654 = vld [vmem:[#allocation10 + $0x18] sm:$0xff]
        %v655 = vld [vmem:[#allocation10 + $0x20] sm:$0xff]
        %v656 = vld [vmem:[#allocation10 + $0x28] sm:$0xff]
        %v657 = vld [vmem:[#allocation10 + $0x30] sm:$0xff]
        %v658 = vld [vmem:[#allocation10 + $0x38] sm:$0xff]
        %v659 = vld [vmem:[#allocation10 + $0x40] sm:$0xff]
        %v660 = vld [vmem:[#allocation10 + $0x48] sm:$0xff]
        %v661 = vld [vmem:[#allocation10 + $0x50] sm:$0xff]
        %v662 = vld [vmem:[#allocation10 + $0x58] sm:$0xff]
        %v663 = vld [vmem:[#allocation10 + $0x60] sm:$0xff]
        %v664 = vld [vmem:[#allocation10 + $0x68] sm:$0xff]
        %v665 = vld [vmem:[#allocation10 + $0x70] sm:$0xff]
        %v666 = vld [vmem:[#allocation10 + $0x78] sm:$0xff]
        %v667 = vld [vmem:[#allocation10 + $0x80] sm:$0xff]
        %v668 = vld [vmem:[#allocation10 + $0x88] sm:$0xff]
        %v669 = vld [vmem:[#allocation10 + $0x90] sm:$0xff]
        %v670 = vld [vmem:[#allocation10 + $0x98] sm:$0xff]
        %v671 = vld [vmem:[#allocation10 + $0xa0] sm:$0xff]
        %v672 = vld [vmem:[#allocation10 + $0xa8] sm:$0xff]
        %v673 = vld [vmem:[#allocation10 + $0xb0] sm:$0xff]
        %v674 = vld [vmem:[#allocation10 + $0xb8] sm:$0xff]
        %v675 = vld [vmem:[#allocation10 + $0xc0] sm:$0xff]
        %v676 = vld [vmem:[#allocation10 + $0xc8] sm:$0xff]
        %v677 = vld [vmem:[#allocation10 + $0xd0] sm:$0xff]
        %v678 = vld [vmem:[#allocation10 + $0xd8] sm:$0xff]
        %v679 = vld [vmem:[#allocation10 + $0xe0] sm:$0xff]
        %v680 = vld [vmem:[#allocation10 + $0xe8] sm:$0xff]
        %v681 = vld [vmem:[#allocation10 + $0xf0] sm:$0xff]
        %v682 = vld [vmem:[#allocation10 + $0xf8] sm:$0xff]
        %v683 = vld [vmem:[#allocation10 + $0x100] sm:$0xff]
        %v684 = vld [vmem:[#allocation10 + $0x108] sm:$0xff]
        %v685 = vld [vmem:[#allocation10 + $0x110] sm:$0xff]
        %v686 = vld [vmem:[#allocation10 + $0x118] sm:$0xff]
        %v687 = vld [vmem:[#allocation10 + $0x120] sm:$0xff]
        %v688 = vld [vmem:[#allocation10 + $0x128] sm:$0xff]
        %v689 = vld [vmem:[#allocation10 + $0x130] sm:$0xff]
        %v690 = vld [vmem:[#allocation10 + $0x138] sm:$0xff]
        %v691 = vld [vmem:[#allocation10 + $0x140] sm:$0xff]
        %v692 = vld [vmem:[#allocation10 + $0x148] sm:$0xff]
        %v693 = vld [vmem:[#allocation10 + $0x150] sm:$0xff]
        %v694 = vld [vmem:[#allocation10 + $0x158] sm:$0xff]
        %v695 = vld [vmem:[#allocation10 + $0x160] sm:$0xff]
        %v696 = vld [vmem:[#allocation10 + $0x168] sm:$0xff]
        %v697 = vld [vmem:[#allocation10 + $0x170] sm:$0xff]
        %v698 = vld [vmem:[#allocation10 + $0x178] sm:$0xff]
        %v699 = vld [vmem:[%s5] sm:$0x7]
        %v700 = vld [vmem:[%s6] sm:$0x1]
        %v702 = vlaneseq
        %v703 = vshrl.u32 %v702, 7
        %v704 = vsub.s32 0, %v703
        %v705 = vrot.slane %v699, %v704
        %v706 = vlaneseq
        %v707 = vshrl.u32 %v706, 7
        %v708 = vsub.s32 1, %v707
        %v709 = vrot.slane %v699, %v708
        %v710 = vlaneseq
        %v711 = vshrl.u32 %v710, 7
        %v712 = vsub.s32 2, %v711
        %v713 = vrot.slane %v699, %v712
        %717 = vmatprep.subr.mxu0 %v604
        %718 = vmatpush1.msra.mxu0 %v603
        %719 = vmatprep.subr.mxu0 %v607
        %720 = vmatpush1.msra.mxu0 %v606
        %721 = vmatprep.subr.mxu0 %v610
        %722 = vmatpush1.msra.mxu0 %v609
        %723 = vmatprep.subr.mxu0 %v613
        %724 = vmatpush1.msra.mxu0 %v612
        %725 = vmatprep.subr.mxu0 %v616
        %726 = vmatpush1.msra.mxu0 %v615
        %727 = vmatprep.subr.mxu0 %v619
        %728 = vmatpush1.msra.mxu0 %v618
        %729 = vmatprep.subr.mxu0 %v622
        %730 = vmatpush1.msra.mxu0 %v621
        %731 = vmatprep.subr.mxu0 %v625
        %732 = vmatpush1.msra.mxu0 %v624
        %733 = vmatprep.subr.mxu0 %v628
        %734 = vmatpush1.msra.mxu0 %v627
        %735 = vmatprep.subr.mxu0 %v631
        %736 = vmatpush1.msra.mxu0 %v630
        %737 = vmatprep.subr.mxu0 %v634
        %738 = vmatpush1.msra.mxu0 %v633
        %739 = vmatprep.subr.mxu0 %v637
        %740 = vmatpush1.msra.mxu0 %v636
        %741 = vmatprep.subr.mxu0 %v640
        %742 = vmatpush1.msra.mxu0 %v639
        %743 = vmatprep.subr.mxu0 %v643
        %744 = vmatpush1.msra.mxu0 %v642
        %745 = vmatprep.subr.mxu0 %v646
        %746 = vmatpush1.msra.mxu0 %v645
        %747 = vmatprep.subr.mxu0 %v649
        %748 = vmatpush1.msra.mxu0 %v648
        %749 = vmatprep.subr.mxu0 0.0
        %750 = vmatpush1.msra.mxu0 0.0
        %751 = vmatprep.subr.mxu0 0.0
        %752 = vmatpush1.msra.mxu0 0.0
        %753 = vmatprep.subr.mxu0 0.0
        %754 = vmatpush1.msra.mxu0 0.0
        %755 = vmatprep.subr.mxu0 0.0
        %756 = vmatpush1.msra.mxu0 0.0
        %757 = vmatprep.subr.mxu0 0.0
        %758 = vmatpush1.msra.mxu0 0.0
        %759 = vmatprep.subr.mxu0 0.0
        %760 = vmatpush1.msra.mxu0 0.0
        %761 = vmatprep.subr.mxu0 0.0
        %762 = vmatpush1.msra.mxu0 0.0
        %763 = vmatprep.subr.mxu0 0.0
        %764 = vmatpush1.msra.mxu0 0.0
        %765 = vmatprep.subr.mxu0 0.0
        %766 = vmatpush1.msra.mxu0 0.0
        %767 = vmatprep.subr.mxu0 0.0
        %768 = vmatpush1.msra.mxu0 0.0
        %769 = vmatprep.subr.mxu0 0.0
        %770 = vmatpush1.msra.mxu0 0.0
        %771 = vmatprep.subr.mxu0 0.0
        %772 = vmatpush1.msra.mxu0 0.0
        %773 = vmatprep.subr.mxu0 0.0
        %774 = vmatpush1.msra.mxu0 0.0
        %775 = vmatprep.subr.mxu0 0.0
        %776 = vmatpush1.msra.mxu0 0.0
        %777 = vmatprep.subr.mxu0 0.0
        %778 = vmatpush1.msra.mxu0 0.0
        %779 = vmatprep.subr.mxu0 0.0
        %780 = vmatpush1.msra.mxu0 0.0
        %781 = vmatprep.mubr.f32.mxu0 0.0
        %782 = vmatmul.mubr.f32.gmra.mrb[0].mxu0 %v599
        %v783 = vpop.f32.mrb[0].mxu0
        %v784 = vadd.f32 %v705, %v783
        %v785 = vpop.f32.mrb[0].mxu0
        %v786 = vadd.f32 %v709, %v785
        %787 = vdwg.mxu0
        %788 = vmatprep.subr.mxu0 0.0
        %789 = vmatpush1.msra.mxu0 %v605
        %790 = vmatprep.subr.mxu0 0.0
        %791 = vmatpush1.msra.mxu0 %v608
        %792 = vmatprep.subr.mxu0 0.0
        %793 = vmatpush1.msra.mxu0 %v611
        %794 = vmatprep.subr.mxu0 0.0
        %795 = vmatpush1.msra.mxu0 %v614
        %796 = vmatprep.subr.mxu0 0.0
        %797 = vmatpush1.msra.mxu0 %v617
        %798 = vmatprep.subr.mxu0 0.0
        %799 = vmatpush1.msra.mxu0 %v620
        %800 = vmatprep.subr.mxu0 0.0
        %801 = vmatpush1.msra.mxu0 %v623
        %802 = vmatprep.subr.mxu0 0.0
        %803 = vmatpush1.msra.mxu0 %v626
        %804 = vmatprep.subr.mxu0 0.0
        %805 = vmatpush1.msra.mxu0 %v629
        %806 = vmatprep.subr.mxu0 0.0
        %807 = vmatpush1.msra.mxu0 %v632
        %808 = vmatprep.subr.mxu0 0.0
        %809 = vmatpush1.msra.mxu0 %v635
        %810 = vmatprep.subr.mxu0 0.0
        %811 = vmatpush1.msra.mxu0 %v638
        %812 = vmatprep.subr.mxu0 0.0
        %813 = vmatpush1.msra.mxu0 %v641
        %814 = vmatprep.subr.mxu0 0.0
        %815 = vmatpush1.msra.mxu0 %v644
        %816 = vmatprep.subr.mxu0 0.0
        %817 = vmatpush1.msra.mxu0 %v647
        %818 = vmatprep.subr.mxu0 0.0
        %819 = vmatpush1.msra.mxu0 %v650
        %820 = vmatprep.subr.mxu0 0.0
        %821 = vmatpush1.msra.mxu0 0.0
        %822 = vmatprep.subr.mxu0 0.0
        %823 = vmatpush1.msra.mxu0 0.0
        %824 = vmatprep.subr.mxu0 0.0
        %825 = vmatpush1.msra.mxu0 0.0
        %826 = vmatprep.subr.mxu0 0.0
        %827 = vmatpush1.msra.mxu0 0.0
        %828 = vmatprep.subr.mxu0 0.0
        %829 = vmatpush1.msra.mxu0 0.0
        %830 = vmatprep.subr.mxu0 0.0
        %831 = vmatpush1.msra.mxu0 0.0
        %832 = vmatprep.subr.mxu0 0.0
        %833 = vmatpush1.msra.mxu0 0.0
        %834 = vmatprep.subr.mxu0 0.0
        %835 = vmatpush1.msra.mxu0 0.0
        %836 = vmatprep.subr.mxu0 0.0
        %837 = vmatpush1.msra.mxu0 0.0
        %838 = vmatprep.subr.mxu0 0.0
        %839 = vmatpush1.msra.mxu0 0.0
        %840 = vmatprep.subr.mxu0 0.0
        %841 = vmatpush1.msra.mxu0 0.0
        %842 = vmatprep.subr.mxu0 0.0
        %843 = vmatpush1.msra.mxu0 0.0
        %844 = vmatprep.subr.mxu0 0.0
        %845 = vmatpush1.msra.mxu0 0.0
        %846 = vmatprep.subr.mxu0 0.0
        %847 = vmatpush1.msra.mxu0 0.0
        %848 = vmatprep.subr.mxu0 0.0
        %849 = vmatpush1.msra.mxu0 0.0
        %850 = vmatprep.subr.mxu0 0.0
        %851 = vmatpush1.msra.mxu0 0.0
        %852 = vmatprep.mubr.f32.mxu0 0.0
        %853 = vmatmul.mubr.f32.gmra.mrb[0].mxu0 %v599
        %v854 = vpop.f32.mrb[0].mxu0
        %v855 = vadd.f32 %v713, %v854
        %v856 = vpop.f32.mrb[0].mxu0
        %857 = vdwg.mxu0
        %858 = vmatprep.subr.mxu0 %v652
        %859 = vmatpush1.msra.mxu0 %v651
        %860 = vmatprep.subr.mxu0 %v655
        %861 = vmatpush1.msra.mxu0 %v654
        %862 = vmatprep.subr.mxu0 %v658
        %863 = vmatpush1.msra.mxu0 %v657
        %864 = vmatprep.subr.mxu0 %v661
        %865 = vmatpush1.msra.mxu0 %v660
        %866 = vmatprep.subr.mxu0 %v664
        %867 = vmatpush1.msra.mxu0 %v663
        %868 = vmatprep.subr.mxu0 %v667
        %869 = vmatpush1.msra.mxu0 %v666
        %870 = vmatprep.subr.mxu0 %v670
        %871 = vmatpush1.msra.mxu0 %v669
        %872 = vmatprep.subr.mxu0 %v673
        %873 = vmatpush1.msra.mxu0 %v672
        %874 = vmatprep.subr.mxu0 %v676
        %875 = vmatpush1.msra.mxu0 %v675
        %876 = vmatprep.subr.mxu0 %v679
        %877 = vmatpush1.msra.mxu0 %v678
        %878 = vmatprep.subr.mxu0 %v682
        %879 = vmatpush1.msra.mxu0 %v681
        %880 = vmatprep.subr.mxu0 %v685
        %881 = vmatpush1.msra.mxu0 %v684
        %882 = vmatprep.subr.mxu0 %v688
        %883 = vmatpush1.msra.mxu0 %v687
        %884 = vmatprep.subr.mxu0 %v691
        %885 = vmatpush1.msra.mxu0 %v690
        %886 = vmatprep.subr.mxu0 %v694
        %887 = vmatpush1.msra.mxu0 %v693
        %888 = vmatprep.subr.mxu0 %v697
        %889 = vmatpush1.msra.mxu0 %v696
        %890 = vmatprep.subr.mxu0 0.0
        %891 = vmatpush1.msra.mxu0 0.0
        %892 = vmatprep.subr.mxu0 0.0
        %893 = vmatpush1.msra.mxu0 0.0
        %894 = vmatprep.subr.mxu0 0.0
        %895 = vmatpush1.msra.mxu0 0.0
        %896 = vmatprep.subr.mxu0 0.0
        %897 = vmatpush1.msra.mxu0 0.0
        %898 = vmatprep.subr.mxu0 0.0
        %899 = vmatpush1.msra.mxu0 0.0
        %900 = vmatprep.subr.mxu0 0.0
        %901 = vmatpush1.msra.mxu0 0.0
        %902 = vmatprep.subr.mxu0 0.0
        %903 = vmatpush1.msra.mxu0 0.0
        %904 = vmatprep.subr.mxu0 0.0
        %905 = vmatpush1.msra.mxu0 0.0
        %906 = vmatprep.subr.mxu0 0.0
        %907 = vmatpush1.msra.mxu0 0.0
        %908 = vmatprep.subr.mxu0 0.0
        %909 = vmatpush1.msra.mxu0 0.0
        %910 = vmatprep.subr.mxu0 0.0
        %911 = vmatpush1.msra.mxu0 0.0
        %912 = vmatprep.subr.mxu0 0.0
        %913 = vmatpush1.msra.mxu0 0.0
        %914 = vmatprep.subr.mxu0 0.0
        %915 = vmatpush1.msra.mxu0 0.0
        %916 = vmatprep.subr.mxu0 0.0
        %917 = vmatpush1.msra.mxu0 0.0
        %918 = vmatprep.subr.mxu0 0.0
        %919 = vmatpush1.msra.mxu0 0.0
        %920 = vmatprep.subr.mxu0 0.0
        %921 = vmatpush1.msra.mxu0 0.0
        %922 = vmatprep.mubr.f32.mxu0 0.0
        %923 = vmatmul.mubr.f32.gmra.mrb[0].mxu0 %v600
        %v924 = vpop.f32.mrb[0].mxu0
        %v925 = vadd.f32 0.0, %v924
        %v926 = vpop.f32.mrb[0].mxu0
        %v927 = vadd.f32 0.0, %v926
        %928 = vdwg.mxu0
        %929 = vmatprep.subr.mxu0 0.0
        %930 = vmatpush1.msra.mxu0 %v653
        %931 = vmatprep.subr.mxu0 0.0
        %932 = vmatpush1.msra.mxu0 %v656
        %933 = vmatprep.subr.mxu0 0.0
        %934 = vmatpush1.msra.mxu0 %v659
        %935 = vmatprep.subr.mxu0 0.0
        %936 = vmatpush1.msra.mxu0 %v662
        %937 = vmatprep.subr.mxu0 0.0
        %938 = vmatpush1.msra.mxu0 %v665
        %939 = vmatprep.subr.mxu0 0.0
        %940 = vmatpush1.msra.mxu0 %v668
        %941 = vmatprep.subr.mxu0 0.0
        %942 = vmatpush1.msra.mxu0 %v671
        %943 = vmatprep.subr.mxu0 0.0
        %944 = vmatpush1.msra.mxu0 %v674
        %945 = vmatprep.subr.mxu0 0.0
        %946 = vmatpush1.msra.mxu0 %v677
        %947 = vmatprep.subr.mxu0 0.0
        %948 = vmatpush1.msra.mxu0 %v680
        %949 = vmatprep.subr.mxu0 0.0
        %950 = vmatpush1.msra.mxu0 %v683
        %951 = vmatprep.subr.mxu0 0.0
        %952 = vmatpush1.msra.mxu0 %v686
        %953 = vmatprep.subr.mxu0 0.0
        %954 = vmatpush1.msra.mxu0 %v689
        %955 = vmatprep.subr.mxu0 0.0
        %956 = vmatpush1.msra.mxu0 %v692
        %957 = vmatprep.subr.mxu0 0.0
        %958 = vmatpush1.msra.mxu0 %v695
        %959 = vmatprep.subr.mxu0 0.0
        %960 = vmatpush1.msra.mxu0 %v698
        %961 = vmatprep.subr.mxu0 0.0
        %962 = vmatpush1.msra.mxu0 0.0
        %963 = vmatprep.subr.mxu0 0.0
        %964 = vmatpush1.msra.mxu0 0.0
        %965 = vmatprep.subr.mxu0 0.0
        %966 = vmatpush1.msra.mxu0 0.0
        %967 = vmatprep.subr.mxu0 0.0
        %968 = vmatpush1.msra.mxu0 0.0
        %969 = vmatprep.subr.mxu0 0.0
        %970 = vmatpush1.msra.mxu0 0.0
        %971 = vmatprep.subr.mxu0 0.0
        %972 = vmatpush1.msra.mxu0 0.0
        %973 = vmatprep.subr.mxu0 0.0
        %974 = vmatpush1.msra.mxu0 0.0
        %975 = vmatprep.subr.mxu0 0.0
        %976 = vmatpush1.msra.mxu0 0.0
        %977 = vmatprep.subr.mxu0 0.0
        %978 = vmatpush1.msra.mxu0 0.0
        %979 = vmatprep.subr.mxu0 0.0
        %980 = vmatpush1.msra.mxu0 0.0
        %981 = vmatprep.subr.mxu0 0.0
        %982 = vmatpush1.msra.mxu0 0.0
        %983 = vmatprep.subr.mxu0 0.0
        %984 = vmatpush1.msra.mxu0 0.0
        %985 = vmatprep.subr.mxu0 0.0
        %986 = vmatpush1.msra.mxu0 0.0
        %987 = vmatprep.subr.mxu0 0.0
        %988 = vmatpush1.msra.mxu0 0.0
        %989 = vmatprep.subr.mxu0 0.0
        %990 = vmatpush1.msra.mxu0 0.0
        %991 = vmatprep.subr.mxu0 0.0
        %992 = vmatpush1.msra.mxu0 0.0
        %993 = vmatprep.mubr.f32.mxu0 0.0
        %994 = vmatmul.mubr.f32.gmra.mrb[0].mxu0 %v600
        %v995 = vpop.f32.mrb[0].mxu0
        %v996 = vadd.f32 0.0, %v995
        %v997 = vpop.f32.mrb[0].mxu0
        %998 = vdwg.mxu0
        %v999 = vadd.f32 %v784, %v925
        %v1000 = vxor.u32 %v999, 2147483648
        %v1001 = vmul.f32 %v1000, 1.442695
        %v1002 = vpow.pop %v1001
        %v1003 = vadd.f32 %v1002, 1.0
        %v1004 = vrcp.pop %v1003
        %v1005 = vmul.f32 1.0, %v1004
        %v1006 = vadd.f32 %v786, %v927
        %v1007 = vxor.u32 %v1006, 2147483648
        %v1008 = vmul.f32 %v1007, 1.442695
        %v1009 = vpow.pop %v1008
        %v1010 = vadd.f32 %v1009, 1.0
        %v1011 = vrcp.pop %v1010
        %v1012 = vmul.f32 1.0, %v1011
        %v1014 = vlaneseq
        %v1015 = vshrl.u32 %v1014, 7
        %v1016 = vsub.s32 0, %v1015
        %v1017 = vrot.slane %v700, %v1016
        %v1019 = vadd.f32 %v996, %v1017
        %v1020 = vmul.f32 %v1005, %v1019
        %v1021 = vadd.f32 %v855, %v1020
        %v1022 = vtanh.pop %v1021
        %v1023 = vsub.f32 1.0, %v1012
        %v1024 = vmul.f32 %v1023, %v1022
        %v1025 = vmul.f32 %v1012, %v600
        %v1026 = vadd.f32 %v1024, %v1025
        %v1027 = vld [vmem:[#allocation12] sm:$0xff]
        %v1028 = vld [vmem:[#allocation12 + $0x8] sm:$0xff]
        %v1029 = vld [vmem:[#allocation12 + $0x10] sm:$0xff]
        %v1030 = vld [vmem:[#allocation12 + $0x18] sm:$0xff]
        %v1031 = vld [vmem:[#allocation12 + $0x20] sm:$0xff]
        %v1032 = vld [vmem:[#allocation12 + $0x28] sm:$0xff]
        %v1033 = vld [vmem:[#allocation12 + $0x30] sm:$0xff]
        %v1034 = vld [vmem:[#allocation12 + $0x38] sm:$0xff]
        %v1035 = vld [vmem:[#allocation12 + $0x40] sm:$0xff]
        %v1036 = vld [vmem:[#allocation12 + $0x48] sm:$0xff]
        %v1037 = vld [vmem:[#allocation12 + $0x50] sm:$0xff]
        %v1038 = vld [vmem:[#allocation12 + $0x58] sm:$0xff]
        %v1039 = vld [vmem:[#allocation12 + $0x60] sm:$0xff]
        %v1040 = vld [vmem:[#allocation12 + $0x68] sm:$0xff]
        %v1041 = vld [vmem:[#allocation12 + $0x70] sm:$0xff]
        %v1042 = vld [vmem:[#allocation12 + $0x78] sm:$0xff]
        %v1043 = vld [vmem:[#allocation12 + $0x80] sm:$0xff]
        %v1044 = vld [vmem:[#allocation12 + $0x88] sm:$0xff]
        %v1045 = vld [vmem:[#allocation12 + $0x90] sm:$0xff]
        %v1046 = vld [vmem:[#allocation12 + $0x98] sm:$0xff]
        %v1047 = vld [vmem:[#allocation12 + $0xa0] sm:$0xff]
        %v1048 = vld [vmem:[#allocation12 + $0xa8] sm:$0xff]
        %v1049 = vld [vmem:[#allocation12 + $0xb0] sm:$0xff]
        %v1050 = vld [vmem:[#allocation12 + $0xb8] sm:$0xff]
        %v1051 = vld [vmem:[#allocation12 + $0xc0] sm:$0xff]
        %v1052 = vld [vmem:[#allocation12 + $0xc8] sm:$0xff]
        %v1053 = vld [vmem:[#allocation12 + $0xd0] sm:$0xff]
        %v1054 = vld [vmem:[#allocation12 + $0xd8] sm:$0xff]
        %v1055 = vld [vmem:[#allocation12 + $0xe0] sm:$0xff]
        %v1056 = vld [vmem:[#allocation12 + $0xe8] sm:$0xff]
        %v1057 = vld [vmem:[#allocation12 + $0xf0] sm:$0xff]
        %v1058 = vld [vmem:[#allocation12 + $0xf8] sm:$0xff]
        %v1059 = vld [vmem:[#allocation12 + $0x100] sm:$0xff]
        %v1060 = vld [vmem:[#allocation12 + $0x108] sm:$0xff]
        %v1061 = vld [vmem:[#allocation12 + $0x110] sm:$0xff]
        %v1062 = vld [vmem:[#allocation12 + $0x118] sm:$0xff]
        %v1063 = vld [vmem:[#allocation12 + $0x120] sm:$0xff]
        %v1064 = vld [vmem:[#allocation12 + $0x128] sm:$0xff]
        %v1065 = vld [vmem:[#allocation12 + $0x130] sm:$0xff]
        %v1066 = vld [vmem:[#allocation12 + $0x138] sm:$0xff]
        %v1067 = vld [vmem:[#allocation12 + $0x140] sm:$0xff]
        %v1068 = vld [vmem:[#allocation12 + $0x148] sm:$0xff]
        %v1069 = vld [vmem:[#allocation12 + $0x150] sm:$0xff]
        %v1070 = vld [vmem:[#allocation12 + $0x158] sm:$0xff]
        %v1071 = vld [vmem:[#allocation12 + $0x160] sm:$0xff]
        %v1072 = vld [vmem:[#allocation12 + $0x168] sm:$0xff]
        %v1073 = vld [vmem:[#allocation12 + $0x170] sm:$0xff]
        %v1074 = vld [vmem:[#allocation12 + $0x178] sm:$0xff]
        %v1075 = vld [vmem:[#allocation13] sm:$0xff]
        %v1076 = vld [vmem:[#allocation13 + $0x8] sm:$0xff]
        %v1077 = vld [vmem:[#allocation13 + $0x10] sm:$0xff]
        %v1078 = vld [vmem:[#allocation13 + $0x18] sm:$0xff]
        %v1079 = vld [vmem:[#allocation13 + $0x20] sm:$0xff]
        %v1080 = vld [vmem:[#allocation13 + $0x28] sm:$0xff]
        %v1081 = vld [vmem:[#allocation13 + $0x30] sm:$0xff]
        %v1082 = vld [vmem:[#allocation13 + $0x38] sm:$0xff]
        %v1083 = vld [vmem:[#allocation13 + $0x40] sm:$0xff]
        %v1084 = vld [vmem:[#allocation13 + $0x48] sm:$0xff]
        %v1085 = vld [vmem:[#allocation13 + $0x50] sm:$0xff]
        %v1086 = vld [vmem:[#allocation13 + $0x58] sm:$0xff]
        %v1087 = vld [vmem:[#allocation13 + $0x60] sm:$0xff]
        %v1088 = vld [vmem:[#allocation13 + $0x68] sm:$0xff]
        %v1089 = vld [vmem:[#allocation13 + $0x70] sm:$0xff]
        %v1090 = vld [vmem:[#allocation13 + $0x78] sm:$0xff]
        %v1091 = vld [vmem:[#allocation13 + $0x80] sm:$0xff]
        %v1092 = vld [vmem:[#allocation13 + $0x88] sm:$0xff]
        %v1093 = vld [vmem:[#allocation13 + $0x90] sm:$0xff]
        %v1094 = vld [vmem:[#allocation13 + $0x98] sm:$0xff]
        %v1095 = vld [vmem:[#allocation13 + $0xa0] sm:$0xff]
        %v1096 = vld [vmem:[#allocation13 + $0xa8] sm:$0xff]
        %v1097 = vld [vmem:[#allocation13 + $0xb0] sm:$0xff]
        %v1098 = vld [vmem:[#allocation13 + $0xb8] sm:$0xff]
        %v1099 = vld [vmem:[#allocation13 + $0xc0] sm:$0xff]
        %v1100 = vld [vmem:[#allocation13 + $0xc8] sm:$0xff]
        %v1101 = vld [vmem:[#allocation13 + $0xd0] sm:$0xff]
        %v1102 = vld [vmem:[#allocation13 + $0xd8] sm:$0xff]
        %v1103 = vld [vmem:[#allocation13 + $0xe0] sm:$0xff]
        %v1104 = vld [vmem:[#allocation13 + $0xe8] sm:$0xff]
        %v1105 = vld [vmem:[#allocation13 + $0xf0] sm:$0xff]
        %v1106 = vld [vmem:[#allocation13 + $0xf8] sm:$0xff]
        %v1107 = vld [vmem:[#allocation13 + $0x100] sm:$0xff]
        %v1108 = vld [vmem:[#allocation13 + $0x108] sm:$0xff]
        %v1109 = vld [vmem:[#allocation13 + $0x110] sm:$0xff]
        %v1110 = vld [vmem:[#allocation13 + $0x118] sm:$0xff]
        %v1111 = vld [vmem:[#allocation13 + $0x120] sm:$0xff]
        %v1112 = vld [vmem:[#allocation13 + $0x128] sm:$0xff]
        %v1113 = vld [vmem:[#allocation13 + $0x130] sm:$0xff]
        %v1114 = vld [vmem:[#allocation13 + $0x138] sm:$0xff]
        %v1115 = vld [vmem:[#allocation13 + $0x140] sm:$0xff]
        %v1116 = vld [vmem:[#allocation13 + $0x148] sm:$0xff]
        %v1117 = vld [vmem:[#allocation13 + $0x150] sm:$0xff]
        %v1118 = vld [vmem:[#allocation13 + $0x158] sm:$0xff]
        %v1119 = vld [vmem:[#allocation13 + $0x160] sm:$0xff]
        %v1120 = vld [vmem:[#allocation13 + $0x168] sm:$0xff]
        %v1121 = vld [vmem:[#allocation13 + $0x170] sm:$0xff]
        %v1122 = vld [vmem:[#allocation13 + $0x178] sm:$0xff]
        %v1123 = vld [vmem:[%s9] sm:$0x7]
        %v1124 = vld [vmem:[%s10] sm:$0x1]
        %v1126 = vlaneseq
        %v1127 = vshrl.u32 %v1126, 7
        %v1128 = vsub.s32 0, %v1127
        %v1129 = vrot.slane %v1123, %v1128
        %v1130 = vlaneseq
        %v1131 = vshrl.u32 %v1130, 7
        %v1132 = vsub.s32 1, %v1131
        %v1133 = vrot.slane %v1123, %v1132
        %v1134 = vlaneseq
        %v1135 = vshrl.u32 %v1134, 7
        %v1136 = vsub.s32 2, %v1135
        %v1137 = vrot.slane %v1123, %v1136
        %1141 = vmatprep.subr.mxu0 %v1028
        %1142 = vmatpush1.msra.mxu0 %v1027
        %1143 = vmatprep.subr.mxu0 %v1031
        %1144 = vmatpush1.msra.mxu0 %v1030
        %1145 = vmatprep.subr.mxu0 %v1034
        %1146 = vmatpush1.msra.mxu0 %v1033
        %1147 = vmatprep.subr.mxu0 %v1037
        %1148 = vmatpush1.msra.mxu0 %v1036
        %1149 = vmatprep.subr.mxu0 %v1040
        %1150 = vmatpush1.msra.mxu0 %v1039
        %1151 = vmatprep.subr.mxu0 %v1043
        %1152 = vmatpush1.msra.mxu0 %v1042
        %1153 = vmatprep.subr.mxu0 %v1046
        %1154 = vmatpush1.msra.mxu0 %v1045
        %1155 = vmatprep.subr.mxu0 %v1049
        %1156 = vmatpush1.msra.mxu0 %v1048
        %1157 = vmatprep.subr.mxu0 %v1052
        %1158 = vmatpush1.msra.mxu0 %v1051
        %1159 = vmatprep.subr.mxu0 %v1055
        %1160 = vmatpush1.msra.mxu0 %v1054
        %1161 = vmatprep.subr.mxu0 %v1058
        %1162 = vmatpush1.msra.mxu0 %v1057
        %1163 = vmatprep.subr.mxu0 %v1061
        %1164 = vmatpush1.msra.mxu0 %v1060
        %1165 = vmatprep.subr.mxu0 %v1064
        %1166 = vmatpush1.msra.mxu0 %v1063
        %1167 = vmatprep.subr.mxu0 %v1067
        %1168 = vmatpush1.msra.mxu0 %v1066
        %1169 = vmatprep.subr.mxu0 %v1070
        %1170 = vmatpush1.msra.mxu0 %v1069
        %1171 = vmatprep.subr.mxu0 %v1073
        %1172 = vmatpush1.msra.mxu0 %v1072
        %1173 = vmatprep.subr.mxu0 0.0
        %1174 = vmatpush1.msra.mxu0 0.0
        %1175 = vmatprep.subr.mxu0 0.0
        %1176 = vmatpush1.msra.mxu0 0.0
        %1177 = vmatprep.subr.mxu0 0.0
        %1178 = vmatpush1.msra.mxu0 0.0
        %1179 = vmatprep.subr.mxu0 0.0
        %1180 = vmatpush1.msra.mxu0 0.0
        %1181 = vmatprep.subr.mxu0 0.0
        %1182 = vmatpush1.msra.mxu0 0.0
        %1183 = vmatprep.subr.mxu0 0.0
        %1184 = vmatpush1.msra.mxu0 0.0
        %1185 = vmatprep.subr.mxu0 0.0
        %1186 = vmatpush1.msra.mxu0 0.0
        %1187 = vmatprep.subr.mxu0 0.0
        %1188 = vmatpush1.msra.mxu0 0.0
        %1189 = vmatprep.subr.mxu0 0.0
        %1190 = vmatpush1.msra.mxu0 0.0
        %1191 = vmatprep.subr.mxu0 0.0
        %1192 = vmatpush1.msra.mxu0 0.0
        %1193 = vmatprep.subr.mxu0 0.0
        %1194 = vmatpush1.msra.mxu0 0.0
        %1195 = vmatprep.subr.mxu0 0.0
        %1196 = vmatpush1.msra.mxu0 0.0
        %1197 = vmatprep.subr.mxu0 0.0
        %1198 = vmatpush1.msra.mxu0 0.0
        %1199 = vmatprep.subr.mxu0 0.0
        %1200 = vmatpush1.msra.mxu0 0.0
        %1201 = vmatprep.subr.mxu0 0.0
        %1202 = vmatpush1.msra.mxu0 0.0
        %1203 = vmatprep.subr.mxu0 0.0
        %1204 = vmatpush1.msra.mxu0 0.0
        %1205 = vmatprep.mubr.f32.mxu0 0.0
        %1206 = vmatmul.mubr.f32.gmra.mrb[0].mxu0 %v1026
        %v1207 = vpop.f32.mrb[0].mxu0
        %v1208 = vadd.f32 %v1129, %v1207
        %v1209 = vpop.f32.mrb[0].mxu0
        %v1210 = vadd.f32 %v1133, %v1209
        %1211 = vdwg.mxu0
        %1212 = vmatprep.subr.mxu0 0.0
        %1213 = vmatpush1.msra.mxu0 %v1029
        %1214 = vmatprep.subr.mxu0 0.0
        %1215 = vmatpush1.msra.mxu0 %v1032
        %1216 = vmatprep.subr.mxu0 0.0
        %1217 = vmatpush1.msra.mxu0 %v1035
        %1218 = vmatprep.subr.mxu0 0.0
        %1219 = vmatpush1.msra.mxu0 %v1038
        %1220 = vmatprep.subr.mxu0 0.0
        %1221 = vmatpush1.msra.mxu0 %v1041
        %1222 = vmatprep.subr.mxu0 0.0
        %1223 = vmatpush1.msra.mxu0 %v1044
        %1224 = vmatprep.subr.mxu0 0.0
        %1225 = vmatpush1.msra.mxu0 %v1047
        %1226 = vmatprep.subr.mxu0 0.0
        %1227 = vmatpush1.msra.mxu0 %v1050
        %1228 = vmatprep.subr.mxu0 0.0
        %1229 = vmatpush1.msra.mxu0 %v1053
        %1230 = vmatprep.subr.mxu0 0.0
        %1231 = vmatpush1.msra.mxu0 %v1056
        %1232 = vmatprep.subr.mxu0 0.0
        %1233 = vmatpush1.msra.mxu0 %v1059
        %1234 = vmatprep.subr.mxu0 0.0
        %1235 = vmatpush1.msra.mxu0 %v1062
        %1236 = vmatprep.subr.mxu0 0.0
        %1237 = vmatpush1.msra.mxu0 %v1065
        %1238 = vmatprep.subr.mxu0 0.0
        %1239 = vmatpush1.msra.mxu0 %v1068
        %1240 = vmatprep.subr.mxu0 0.0
        %1241 = vmatpush1.msra.mxu0 %v1071
        %1242 = vmatprep.subr.mxu0 0.0
        %1243 = vmatpush1.msra.mxu0 %v1074
        %1244 = vmatprep.subr.mxu0 0.0
        %1245 = vmatpush1.msra.mxu0 0.0
        %1246 = vmatprep.subr.mxu0 0.0
        %1247 = vmatpush1.msra.mxu0 0.0
        %1248 = vmatprep.subr.mxu0 0.0
        %1249 = vmatpush1.msra.mxu0 0.0
        %1250 = vmatprep.subr.mxu0 0.0
        %1251 = vmatpush1.msra.mxu0 0.0
        %1252 = vmatprep.subr.mxu0 0.0
        %1253 = vmatpush1.msra.mxu0 0.0
        %1254 = vmatprep.subr.mxu0 0.0
        %1255 = vmatpush1.msra.mxu0 0.0
        %1256 = vmatprep.subr.mxu0 0.0
        %1257 = vmatpush1.msra.mxu0 0.0
        %1258 = vmatprep.subr.mxu0 0.0
        %1259 = vmatpush1.msra.mxu0 0.0
        %1260 = vmatprep.subr.mxu0 0.0
        %1261 = vmatpush1.msra.mxu0 0.0
        %1262 = vmatprep.subr.mxu0 0.0
        %1263 = vmatpush1.msra.mxu0 0.0
        %1264 = vmatprep.subr.mxu0 0.0
        %1265 = vmatpush1.msra.mxu0 0.0
        %1266 = vmatprep.subr.mxu0 0.0
        %1267 = vmatpush1.msra.mxu0 0.0
        %1268 = vmatprep.subr.mxu0 0.0
        %1269 = vmatpush1.msra.mxu0 0.0
        %1270 = vmatprep.subr.mxu0 0.0
        %1271 = vmatpush1.msra.mxu0 0.0
        %1272 = vmatprep.subr.mxu0 0.0
        %1273 = vmatpush1.msra.mxu0 0.0
        %1274 = vmatprep.subr.mxu0 0.0
        %1275 = vmatpush1.msra.mxu0 0.0
        %1276 = vmatprep.mubr.f32.mxu0 0.0
        %1277 = vmatmul.mubr.f32.gmra.mrb[0].mxu0 %v1026
        %v1278 = vpop.f32.mrb[0].mxu0
        %v1279 = vadd.f32 %v1137, %v1278
        %v1280 = vpop.f32.mrb[0].mxu0
        %1281 = vdwg.mxu0
        %1282 = vmatprep.subr.mxu0 %v1076
        %1283 = vmatpush1.msra.mxu0 %v1075
        %1284 = vmatprep.subr.mxu0 %v1079
        %1285 = vmatpush1.msra.mxu0 %v1078
        %1286 = vmatprep.subr.mxu0 %v1082
        %1287 = vmatpush1.msra.mxu0 %v1081
        %1288 = vmatprep.subr.mxu0 %v1085
        %1289 = vmatpush1.msra.mxu0 %v1084
        %1290 = vmatprep.subr.mxu0 %v1088
        %1291 = vmatpush1.msra.mxu0 %v1087
        %1292 = vmatprep.subr.mxu0 %v1091
        %1293 = vmatpush1.msra.mxu0 %v1090
        %1294 = vmatprep.subr.mxu0 %v1094
        %1295 = vmatpush1.msra.mxu0 %v1093
        %1296 = vmatprep.subr.mxu0 %v1097
        %1297 = vmatpush1.msra.mxu0 %v1096
        %1298 = vmatprep.subr.mxu0 %v1100
        %1299 = vmatpush1.msra.mxu0 %v1099
        %1300 = vmatprep.subr.mxu0 %v1103
        %1301 = vmatpush1.msra.mxu0 %v1102
        %1302 = vmatprep.subr.mxu0 %v1106
        %1303 = vmatpush1.msra.mxu0 %v1105
        %1304 = vmatprep.subr.mxu0 %v1109
        %1305 = vmatpush1.msra.mxu0 %v1108
        %1306 = vmatprep.subr.mxu0 %v1112
        %1307 = vmatpush1.msra.mxu0 %v1111
        %1308 = vmatprep.subr.mxu0 %v1115
        %1309 = vmatpush1.msra.mxu0 %v1114
        %1310 = vmatprep.subr.mxu0 %v1118
        %1311 = vmatpush1.msra.mxu0 %v1117
        %1312 = vmatprep.subr.mxu0 %v1121
        %1313 = vmatpush1.msra.mxu0 %v1120
        %1314 = vmatprep.subr.mxu0 0.0
        %1315 = vmatpush1.msra.mxu0 0.0
        %1316 = vmatprep.subr.mxu0 0.0
        %1317 = vmatpush1.msra.mxu0 0.0
        %1318 = vmatprep.subr.mxu0 0.0
        %1319 = vmatpush1.msra.mxu0 0.0
        %1320 = vmatprep.subr.mxu0 0.0
        %1321 = vmatpush1.msra.mxu0 0.0
        %1322 = vmatprep.subr.mxu0 0.0
        %1323 = vmatpush1.msra.mxu0 0.0
        %1324 = vmatprep.subr.mxu0 0.0
        %1325 = vmatpush1.msra.mxu0 0.0
        %1326 = vmatprep.subr.mxu0 0.0
        %1327 = vmatpush1.msra.mxu0 0.0
        %1328 = vmatprep.subr.mxu0 0.0
        %1329 = vmatpush1.msra.mxu0 0.0
        %1330 = vmatprep.subr.mxu0 0.0
        %1331 = vmatpush1.msra.mxu0 0.0
        %1332 = vmatprep.subr.mxu0 0.0
        %1333 = vmatpush1.msra.mxu0 0.0
        %1334 = vmatprep.subr.mxu0 0.0
        %1335 = vmatpush1.msra.mxu0 0.0
        %1336 = vmatprep.subr.mxu0 0.0
        %1337 = vmatpush1.msra.mxu0 0.0
        %1338 = vmatprep.subr.mxu0 0.0
        %1339 = vmatpush1.msra.mxu0 0.0
        %1340 = vmatprep.subr.mxu0 0.0
        %1341 = vmatpush1.msra.mxu0 0.0
        %1342 = vmatprep.subr.mxu0 0.0
        %1343 = vmatpush1.msra.mxu0 0.0
        %1344 = vmatprep.subr.mxu0 0.0
        %1345 = vmatpush1.msra.mxu0 0.0
        %1346 = vmatprep.mubr.f32.mxu0 0.0
        %1347 = vmatmul.mubr.f32.gmra.mrb[0].mxu0 %v602
        %v1348 = vpop.f32.mrb[0].mxu0
        %v1349 = vadd.f32 0.0, %v1348
        %v1350 = vpop.f32.mrb[0].mxu0
        %v1351 = vadd.f32 0.0, %v1350
        %1352 = vdwg.mxu0
        %1353 = vmatprep.subr.mxu0 0.0
        %1354 = vmatpush1.msra.mxu0 %v1077
        %1355 = vmatprep.subr.mxu0 0.0
        %1356 = vmatpush1.msra.mxu0 %v1080
        %1357 = vmatprep.subr.mxu0 0.0
        %1358 = vmatpush1.msra.mxu0 %v1083
        %1359 = vmatprep.subr.mxu0 0.0
        %1360 = vmatpush1.msra.mxu0 %v1086
        %1361 = vmatprep.subr.mxu0 0.0
        %1362 = vmatpush1.msra.mxu0 %v1089
        %1363 = vmatprep.subr.mxu0 0.0
        %1364 = vmatpush1.msra.mxu0 %v1092
        %1365 = vmatprep.subr.mxu0 0.0
        %1366 = vmatpush1.msra.mxu0 %v1095
        %1367 = vmatprep.subr.mxu0 0.0
        %1368 = vmatpush1.msra.mxu0 %v1098
        %1369 = vmatprep.subr.mxu0 0.0
        %1370 = vmatpush1.msra.mxu0 %v1101
        %1371 = vmatprep.subr.mxu0 0.0
        %1372 = vmatpush1.msra.mxu0 %v1104
        %1373 = vmatprep.subr.mxu0 0.0
        %1374 = vmatpush1.msra.mxu0 %v1107
        %1375 = vmatprep.subr.mxu0 0.0
        %1376 = vmatpush1.msra.mxu0 %v1110
        %1377 = vmatprep.subr.mxu0 0.0
        %1378 = vmatpush1.msra.mxu0 %v1113
        %1379 = vmatprep.subr.mxu0 0.0
        %1380 = vmatpush1.msra.mxu0 %v1116
        %1381 = vmatprep.subr.mxu0 0.0
        %1382 = vmatpush1.msra.mxu0 %v1119
        %1383 = vmatprep.subr.mxu0 0.0
        %1384 = vmatpush1.msra.mxu0 %v1122
        %1385 = vmatprep.subr.mxu0 0.0
        %1386 = vmatpush1.msra.mxu0 0.0
        %1387 = vmatprep.subr.mxu0 0.0
        %1388 = vmatpush1.msra.mxu0 0.0
        %1389 = vmatprep.subr.mxu0 0.0
        %1390 = vmatpush1.msra.mxu0 0.0
        %1391 = vmatprep.subr.mxu0 0.0
        %1392 = vmatpush1.msra.mxu0 0.0
        %1393 = vmatprep.subr.mxu0 0.0
        %1394 = vmatpush1.msra.mxu0 0.0
        %1395 = vmatprep.subr.mxu0 0.0
        %1396 = vmatpush1.msra.mxu0 0.0
        %1397 = vmatprep.subr.mxu0 0.0
        %1398 = vmatpush1.msra.mxu0 0.0
        %1399 = vmatprep.subr.mxu0 0.0
        %1400 = vmatpush1.msra.mxu0 0.0
        %1401 = vmatprep.subr.mxu0 0.0
        %1402 = vmatpush1.msra.mxu0 0.0
        %1403 = vmatprep.subr.mxu0 0.0
        %1404 = vmatpush1.msra.mxu0 0.0
        %1405 = vmatprep.subr.mxu0 0.0
        %1406 = vmatpush1.msra.mxu0 0.0
        %1407 = vmatprep.subr.mxu0 0.0
        %1408 = vmatpush1.msra.mxu0 0.0
        %1409 = vmatprep.subr.mxu0 0.0
        %1410 = vmatpush1.msra.mxu0 0.0
        %1411 = vmatprep.subr.mxu0 0.0
        %1412 = vmatpush1.msra.mxu0 0.0
        %1413 = vmatprep.subr.mxu0 0.0
        %1414 = vmatpush1.msra.mxu0 0.0
        %1415 = vmatprep.subr.mxu0 0.0
        %1416 = vmatpush1.msra.mxu0 0.0
        %1417 = vmatprep.mubr.f32.mxu0 0.0
        %1418 = vmatmul.mubr.f32.gmra.mrb[0].mxu0 %v602
        %v1419 = vpop.f32.mrb[0].mxu0
        %v1420 = vadd.f32 0.0, %v1419
        %v1421 = vpop.f32.mrb[0].mxu0
        %1422 = vdwg.mxu0
        %v1423 = vadd.f32 %v1208, %v1349
        %v1424 = vxor.u32 %v1423, 2147483648
        %v1425 = vmul.f32 %v1424, 1.442695
        %v1426 = vpow.pop %v1425
        %v1427 = vadd.f32 %v1426, 1.0
        %v1428 = vrcp.pop %v1427
        %v1429 = vmul.f32 1.0, %v1428
        %v1430 = vadd.f32 %v1210, %v1351
        %v1431 = vxor.u32 %v1430, 2147483648
        %v1432 = vmul.f32 %v1431, 1.442695
        %v1433 = vpow.pop %v1432
        %v1434 = vadd.f32 %v1433, 1.0
        %v1435 = vrcp.pop %v1434
        %v1436 = vmul.f32 1.0, %v1435
        %v1438 = vlaneseq
        %v1439 = vshrl.u32 %v1438, 7
        %v1440 = vsub.s32 0, %v1439
        %v1441 = vrot.slane %v1124, %v1440
        %v1443 = vadd.f32 %v1420, %v1441
        %v1444 = vmul.f32 %v1429, %v1443
        %v1445 = vadd.f32 %v1279, %v1444
        %v1446 = vtanh.pop %v1445
        %v1447 = vsub.f32 1.0, %v1436
        %v1448 = vmul.f32 %v1447, %v1446
        %v1449 = vmul.f32 %v1436, %v602
        %v1450 = vadd.f32 %v1448, %v1449
        %v1451 = vld [vmem:[#allocation15] sm:$0xff]
        %v1452 = vld [vmem:[#allocation15 + $0x8] sm:$0xff]
        %v1453 = vld [vmem:[#allocation15 + $0x10] sm:$0xff]
        %v1454 = vld [vmem:[#allocation15 + $0x18] sm:$0xff]
        %v1455 = vld [vmem:[#allocation15 + $0x20] sm:$0xff]
        %v1456 = vld [vmem:[#allocation15 + $0x28] sm:$0xff]
        %v1457 = vld [vmem:[#allocation15 + $0x30] sm:$0xff]
        %v1458 = vld [vmem:[#allocation15 + $0x38] sm:$0xff]
        %v1459 = vld [vmem:[#allocation15 + $0x40] sm:$0xff]
        %v1460 = vld [vmem:[#allocation15 + $0x48] sm:$0xff]
        %v1461 = vld [vmem:[#allocation15 + $0x50] sm:$0xff]
        %v1462 = vld [vmem:[#allocation15 + $0x58] sm:$0xff]
        %v1463 = vld [vmem:[#allocation15 + $0x60] sm:$0xff]
        %v1464 = vld [vmem:[#allocation15 + $0x68] sm:$0xff]
        %v1465 = vld [vmem:[#allocation15 + $0x70] sm:$0xff]
        %v1466 = vld [vmem:[#allocation15 + $0x78] sm:$0xff]
        %v1467 = vld [vmem:[%s12] sm:$0x1]
        %v1469 = vlaneseq
        %v1470 = vshrl.u32 %v1469, 7
        %v1471 = vsub.s32 0, %v1470
        %v1472 = vrot.slane %v1467, %v1471
        %1474 = vmatprep.subr.mxu0 0.0
        %1475 = vmatpush1.msra.mxu0 %v1451
        %1476 = vmatprep.subr.mxu0 0.0
        %1477 = vmatpush1.msra.mxu0 %v1452
        %1478 = vmatprep.subr.mxu0 0.0
        %1479 = vmatpush1.msra.mxu0 %v1453
        %1480 = vmatprep.subr.mxu0 0.0
        %1481 = vmatpush1.msra.mxu0 %v1454
        %1482 = vmatprep.subr.mxu0 0.0
        %1483 = vmatpush1.msra.mxu0 %v1455
        %1484 = vmatprep.subr.mxu0 0.0
        %1485 = vmatpush1.msra.mxu0 %v1456
        %1486 = vmatprep.subr.mxu0 0.0
        %1487 = vmatpush1.msra.mxu0 %v1457
        %1488 = vmatprep.subr.mxu0 0.0
        %1489 = vmatpush1.msra.mxu0 %v1458
        %1490 = vmatprep.subr.mxu0 0.0
        %1491 = vmatpush1.msra.mxu0 %v1459
        %1492 = vmatprep.subr.mxu0 0.0
        %1493 = vmatpush1.msra.mxu0 %v1460
        %1494 = vmatprep.subr.mxu0 0.0
        %1495 = vmatpush1.msra.mxu0 %v1461
        %1496 = vmatprep.subr.mxu0 0.0
        %1497 = vmatpush1.msra.mxu0 %v1462
        %1498 = vmatprep.subr.mxu0 0.0
        %1499 = vmatpush1.msra.mxu0 %v1463
        %1500 = vmatprep.subr.mxu0 0.0
        %1501 = vmatpush1.msra.mxu0 %v1464
        %1502 = vmatprep.subr.mxu0 0.0
        %1503 = vmatpush1.msra.mxu0 %v1465
        %1504 = vmatprep.subr.mxu0 0.0
        %1505 = vmatpush1.msra.mxu0 %v1466
        %1506 = vmatprep.subr.mxu0 0.0
        %1507 = vmatpush1.msra.mxu0 0.0
        %1508 = vmatprep.subr.mxu0 0.0
        %1509 = vmatpush1.msra.mxu0 0.0
        %1510 = vmatprep.subr.mxu0 0.0
        %1511 = vmatpush1.msra.mxu0 0.0
        %1512 = vmatprep.subr.mxu0 0.0
        %1513 = vmatpush1.msra.mxu0 0.0
        %1514 = vmatprep.subr.mxu0 0.0
        %1515 = vmatpush1.msra.mxu0 0.0
        %1516 = vmatprep.subr.mxu0 0.0
        %1517 = vmatpush1.msra.mxu0 0.0
        %1518 = vmatprep.subr.mxu0 0.0
        %1519 = vmatpush1.msra.mxu0 0.0
        %1520 = vmatprep.subr.mxu0 0.0
        %1521 = vmatpush1.msra.mxu0 0.0
        %1522 = vmatprep.subr.mxu0 0.0
        %1523 = vmatpush1.msra.mxu0 0.0
        %1524 = vmatprep.subr.mxu0 0.0
        %1525 = vmatpush1.msra.mxu0 0.0
        %1526 = vmatprep.subr.mxu0 0.0
        %1527 = vmatpush1.msra.mxu0 0.0
        %1528 = vmatprep.subr.mxu0 0.0
        %1529 = vmatpush1.msra.mxu0 0.0
        %1530 = vmatprep.subr.mxu0 0.0
        %1531 = vmatpush1.msra.mxu0 0.0
        %1532 = vmatprep.subr.mxu0 0.0
        %1533 = vmatpush1.msra.mxu0 0.0
        %1534 = vmatprep.subr.mxu0 0.0
        %1535 = vmatpush1.msra.mxu0 0.0
        %1536 = vmatprep.subr.mxu0 0.0
        %1537 = vmatpush1.msra.mxu0 0.0
        %1538 = vmatprep.mubr.f32.mxu0 0.0
        %1539 = vmatmul.mubr.f32.gmra.mrb[0].mxu0 %v1450
        %v1540 = vpop.f32.mrb[0].mxu0
        %v1541 = vadd.f32 %v1472, %v1540
        %v1542 = vpop.f32.mrb[0].mxu0
        %1543 = vdwg.mxu0
        %1544 = vst [vmem:[%s522] sm:$0xff] %v1541
        %1545 = vst [vmem:[#allocation17] sm:$0xff] %v1026
        %1546 = vst [vmem:[%s601] sm:$0xff] %v1450
        %s1547 = sand.u32 %s298, 1
        %s1548 = scalar_lea.sflag [#allocation6], %s1547
        %s1549 = sand.u32 %s298, 1
        %s1550 = smul.addr %s1549, 8
        %s1551 = scalar_lea.vmem [#allocation16], %s1550
        // Predicated region
        $region101: #{tpu_custom_call.1} parent=67 // pred_check
          %p1552 = pneg %p308
        $region102: #{tpu_custom_call.1} parent=67 // pred_check_branch
          %1554 = sbr.rel (%p1552) target = $region104
        $region103: #{tpu_custom_call.1} parent=67 // pred_region
          %s1556 = ssub.s32 128, 128
          %1557 = vsyncadd %s1548, %s1556
          %s1558 = smul.addr %s38, 128
          %s1559 = scalar_lea.hbm %s13, %s1558
          %s1561 = sshll.u32 %s1551, 4
          %s1562 = int_to_ptr.vmem [resolvable:$true] %s1561
          %1564 = dma.vmem_to_hbm [thread:$0]  %s1562, 128, %s1559, %s1548
        $region104: #{tpu_custom_call.1} parent=67 // pred_fallthru
          _
        // Predicated region
        $region105: #{tpu_custom_call.1} parent=67 // pred_check
          %p1565 = pneg %p329
        $region106: #{tpu_custom_call.1} parent=67 // pred_check_branch
          %1567 = sbr.rel (%p1565) target = $region108
        $region107: #{tpu_custom_call.1} parent=67 // pred_region
          %s1569 = ssub.s32 256, 256
          %1570 = vsyncadd [#allocation18], %s1569
          %s1571 = sshll.u32 [#allocation17], 4
          %s1572 = int_to_ptr.vmem [resolvable:$true] %s1571
          %1577 = dma.vmem_to_hbm [thread:$0]  %s1572, 256, %s14, [#allocation18], 128, 128, 8
        $region108: #{tpu_custom_call.1} parent=67 // pred_fallthru
          _
        // Predicated region
        $region109: #{tpu_custom_call.1} parent=67 // pred_check
          %p1578 = pneg %p329
        $region110: #{tpu_custom_call.1} parent=67 // pred_check_branch
          %1580 = sbr.rel (%p1578) target = $region112
        $region111: #{tpu_custom_call.1} parent=67 // pred_region
          %1581 = dma.done [#allocation18], 256
        $region112: #{tpu_custom_call.1} parent=67 // pred_fallthru
          _
      $region68: #{tpu_custom_call.1} parent=5 // pred_fallthru
        _
      %p1582 = scmp.le.s32.totalorder 2, %s33
      // Predicated region
      $region113: #{tpu_custom_call.1} parent=5 // pred_check
        %p1583 = pneg %p1582
      $region114: #{tpu_custom_call.1} parent=5 // pred_check_branch
        %1585 = sbr.rel (%p1583) target = $region116
      $region115: #{tpu_custom_call.1} parent=5 // pred_region
        %s1586 = ssub.s32 %s33, 2
        // Predicated region
        $region117: #{tpu_custom_call.1} parent=115 // pred_check
          %p1587 = pneg %p314
        $region118: #{tpu_custom_call.1} parent=115 // pred_check_branch
          %1589 = sbr.rel (%p1587) target = $region120
        $region119: #{tpu_custom_call.1} parent=115 // pred_region
          %s1590 = sand.u32 %s299, 1
          %s1591 = scalar_lea.sflag [#allocation6], %s1590
          %s1592 = sand.u32 %s299, 1
          %s1593 = smul.addr %s1592, 8
          %s1594 = scalar_lea.vmem [#allocation16], %s1593
          %1595 = dma.done %s1591, 128
        $region120: #{tpu_custom_call.1} parent=115 // pred_fallthru
          _
      $region116: #{tpu_custom_call.1} parent=5 // pred_fallthru
        _
    $region6: #{tpu_custom_call.1} parent=1 // loop_footer
      %s37 = sadd.s32 1, %s33
    $region7: #{tpu_custom_call.1} parent=1 // loop_footer_branch
      %32 = sbr.rel target = $region3
    $region8: #{tpu_custom_call.1} parent=1 // loop_exit
      _
    %1596 = vsyncpa [#allocation5], 1
    %s1597 = scalar_lea.sflag [#allocation5], 1
    %1598 = vsyncpa %s1597, 1
    %1599 = vsyncpa [#allocation8], 1
    %1600 = vsyncpa [#allocation11], 1
    %1601 = vsyncpa [#allocation14], 1
    %1602 = vsyncpa [#allocation6], 1
    %s1603 = scalar_lea.sflag [#allocation6], 1
    %1604 = vsyncpa %s1603, 1
    %1605 = vsyncpa [#allocation18], 1

</llo_original>
